<compile_context>
chip_gen: v6e
topology: v6e:2x2x1
jax: 0.10.0
libtpu: 0.0.40
codegen_flags: <defaults>
</compile_context>

<pallas_src>
import jax
import jax.numpy as jnp
from jax.experimental import pallas as pl
from jax.experimental.pallas import tpu as pltpu

H_IN, W_IN = 30, 4        # input spatial size implied by the conv kernel sizes
H_PAD = 32                # rows padded to a full sublane tile (see wrapper)
C = 32                    # channels of every conv
FLAT = C * C              # 1024
HALF = FLAT // 2          # fc1 K split for the two-half weight DMA
HID = 512
OUT = 2
OUT_PAD = 128             # fc2 output padded to a full lane tile


def _relu(v):
    return jnp.maximum(v, 0.0)


def cnn_nv_kernel(x_ref, w1_ref, b1_ref, w2_ref, b2_ref, w3t_ref, b3_ref,
                  w4_ref, b4_ref, wfc1_hbm, bfc1_ref, wfc2_ref, bfc2_ref,
                  out_ref, wfc1_vmem, dma_sem):
    f32 = jnp.float32
    bf16 = jnp.bfloat16
    bsz = x_ref.shape[0]

    # Prefetch the 1 MiB bf16 fc1 weight in two 512 KiB halves; the DMAs
    # overlap the conv chain (and half 1 also overlaps the first fc1 dot).
    cp0 = pltpu.make_async_copy(wfc1_hbm.at[0], wfc1_vmem.at[0], dma_sem.at[0])
    cp1 = pltpu.make_async_copy(wfc1_hbm.at[1], wfc1_vmem.at[1], dma_sem.at[1])
    cp0.start()
    cp1.start()

    # conv1 (1x4) + ReLU (+ torch transpose(1,3)), de-batched: one 2D matmul
    # with rows (b, h) and columns the 32 output channels.
    x2d = x_ref[...].reshape(bsz * H_PAD, W_IN).astype(bf16)        # (B*32, 4)
    a1 = _relu(jnp.dot(x2d, w1_ref[...],
                       preferred_element_type=f32) + b1_ref[...])   # (B*32, 32)
    a1 = a1.reshape(bsz, H_PAD, C)                                   # (B, 32, 32)

    # conv2 (30x1) + ReLU (+ transpose(1,2)): per-batch W2 @ a1[b].  The two
    # padded h-columns of W2 are zero, so the padded rows of a1 contribute 0.
    w2 = jnp.broadcast_to(w2_ref[...], (bsz, C, H_PAD))              # bf16
    a2 = _relu(jnp.einsum('bch,bhw->bcw', w2, a1.astype(bf16),
                          preferred_element_type=f32) + b2_ref[...])  # (B,32,32)

    # conv3 (1x32) + ReLU (+ transpose(1,3)), de-batched: one 2D matmul.
    a2_2d = a2.reshape(bsz * C, C).astype(bf16)                      # (B*32, 32)
    a3 = _relu(jnp.dot(a2_2d, w3t_ref[...],
                       preferred_element_type=f32) + b3_ref[...])    # (B*32, 32)
    a3 = a3.reshape(bsz, C, C)

    # conv4 (32x1) + ReLU (+ transpose(1,2)): per-batch W4 @ a3[b].
    w4 = jnp.broadcast_to(w4_ref[...], (bsz, C, C))                  # bf16
    a4 = _relu(jnp.einsum('bch,bhw->bcw', w4, a3.astype(bf16),
                          preferred_element_type=f32) + b4_ref[...])  # (B,32,32)

    # fc1.  torch's view(B,-1) flattens row-major over (c, w): one fold + one
    # bf16 cast, then a single K=1024 contraction (two K=512 dots so the
    # second weight-half DMA can still be hidden under dot 0).
    flat = a4.reshape(bsz, FLAT).astype(bf16)                        # (B, 1024)
    cp0.wait()
    h = jnp.dot(flat[:, :HALF], wfc1_vmem[0], preferred_element_type=f32)
    cp1.wait()
    h = h + jnp.dot(flat[:, HALF:], wfc1_vmem[1], preferred_element_type=f32)
    h = h + bfc1_ref[...]                                            # (B, 512) f32

    # fc2 (padded to 128 lanes so the only HBM store is lane-dense).
    out_ref[...] = (jnp.dot(h.astype(bf16), wfc2_ref[...],
                            preferred_element_type=f32) + bfc2_ref[...])


def cnn_nv_forward(x, params):
    (w1, b1, w2, b2, w3t, b3, w4, b4, wfc1s, bfc1, wfc2p, bfc2p) = params
    bsz = x.shape[0]

    # Pad the 30 input rows to a full 32-row sublane tile; the extra rows hit
    # zero columns of the padded conv2 weight, so results are unchanged.  This
    # keeps every in-kernel reshape tile-aligned.
    xp = jnp.pad(x, ((0, 0), (0, H_PAD - H_IN), (0, 0)))

    def vmem():
        return pl.BlockSpec(memory_space=pltpu.MemorySpace.VMEM)

    out_pad = pl.pallas_call(
        cnn_nv_kernel,
        out_shape=jax.ShapeDtypeStruct((bsz, OUT_PAD), jnp.float32),
        in_specs=([vmem() for _ in range(9)]
                  + [pl.BlockSpec(memory_space=pl.ANY)]      # fc1 weight: stays in HBM
                  + [vmem() for _ in range(3)]),
        out_specs=vmem(),
        scratch_shapes=[pltpu.VMEM((2, HALF, HID), jnp.bfloat16),  # fc1 prefetch buffer
                        pltpu.SemaphoreType.DMA((2,))],
    )(xp, w1, b1, w2, b2, w3t, b3, w4, b4, wfc1s, bfc1, wfc2p, bfc2p)

    return out_pad[:, :OUT]


def init_params(key):
    """Deterministic PyTorch-like uniform(-1/sqrt(fan_in), 1/sqrt(fan_in)) init."""
    ks = jax.random.split(key, 12)

    def uni(k, shape, fan_in):
        bound = 1.0 / (fan_in ** 0.5)
        return jax.random.uniform(k, shape, jnp.float32, -bound, bound)

    # torch layouts: conv weight (out_c, in_c, kH, kW), linear weight (out, in).
    W1 = uni(ks[0], (32, 1, 1, 4), 4);    b1 = uni(ks[1], (32,), 4)
    W2 = uni(ks[2], (32, 1, 30, 1), 30);  b2 = uni(ks[3], (32,), 30)
    W3 = uni(ks[4], (32, 1, 1, 32), 32);  b3 = uni(ks[5], (32,), 32)
    W4 = uni(ks[6], (32, 1, 32, 1), 32);  b4 = uni(ks[7], (32,), 32)
    Wfc1 = uni(ks[8], (HID, FLAT), FLAT); bfc1 = uni(ks[9], (HID,), FLAT)
    Wfc2 = uni(ks[10], (OUT, HID), HID);  bfc2 = uni(ks[11], (OUT,), HID)

    bf16 = jnp.bfloat16

    # conv2 weight padded with two zero h-columns to match the padded input.
    W2p = jnp.zeros((C, H_PAD), jnp.float32).at[:, :H_IN].set(W2.reshape(C, H_IN))

    # fc2 padded to 128 output lanes (zeros do not change the first 2 logits).
    wfc2t_pad = jnp.zeros((HID, OUT_PAD), jnp.float32).at[:, :OUT].set(Wfc2.T)
    bfc2_pad = jnp.zeros((1, OUT_PAD), jnp.float32).at[0, :OUT].set(bfc2)

    # Re-layout for the matmul formulation inside the kernel.  All matmul
    # operands (weights) are stored bf16; biases stay f32.
    return (
        W1.reshape(C, W_IN).T.astype(bf16),          # (4, 32)      conv1 (w, c)
        b1.reshape(1, C),                            # (1, 32)      f32
        W2p[None].astype(bf16),                      # (1, 32, 32)  conv2 (c, h) padded
        b2.reshape(1, C, 1),
        W3.reshape(C, C).T.astype(bf16),             # (32, 32)     conv3 (w, c)
        b3.reshape(1, C),
        W4.reshape(C, C)[None].astype(bf16),         # (1, 32, 32)  conv4 (c, h)
        b4.reshape(1, C, 1),
        Wfc1.T.reshape(2, HALF, HID).astype(bf16),   # (2, 512, 512) bf16, DMA'd in halves
        bfc1.reshape(1, HID),
        wfc2t_pad.astype(bf16),                      # (512, 128)   bf16
        bfc2_pad,                                    # (1, 128)     f32
    )


def reference_forward(x, params):
    """Pure-JAX reference mirroring the kernel's bf16-operand / f32-accumulate numerics."""
    (w1, b1, w2p, b2, w3t, b3, w4, b4, wfc1s, bfc1, wfc2p, bfc2p) = params
    P = jax.lax.Precision.HIGHEST
    f32 = jnp.float32
    q = lambda a: a.astype(jnp.bfloat16).astype(f32)   # operand rounding like the MXU path
    B = x.shape[0]

    a1 = jax.nn.relu(jnp.einsum('bhw,wc->bhc', q(x), w1.astype(f32), precision=P)
                     + b1.reshape(1, 1, C))
    a2 = jax.nn.relu(jnp.einsum('ch,bhw->bcw', w2p[0, :, :H_IN].astype(f32), q(a1),
                                precision=P) + b2)
    a3 = jax.nn.relu(jnp.einsum('bhw,wc->bhc', q(a2), w3t.astype(f32), precision=P)
                     + b3.reshape(1, 1, C))
    a4 = jax.nn.relu(jnp.einsum('ch,bhw->bcw', w4[0].astype(f32), q(a3), precision=P)
                     + b4)
    flat = a4.reshape(B, FLAT)                           # torch view(B, -1)
    h = jnp.dot(q(flat), wfc1s.reshape(FLAT, HID).astype(f32), precision=P) + bfc1
    out = jnp.dot(q(h), wfc2p.astype(f32), precision=P) + bfc2p
    return out[:, :OUT]


if __name__ == "__main__":
    key = jax.random.PRNGKey(0)
    pkey, xkey = jax.random.split(key)
    params = init_params(pkey)

    # Input shape fixed by the architecture: (B, 30, 4) (== torch x[0] pre-unsqueeze)
    x = jax.random.normal(xkey, (2, H_IN, W_IN), jnp.float32)

    fwd = jax.jit(cnn_nv_forward)
    out = jax.block_until_ready(fwd(x, params))
    ref = jax.block_until_ready(reference_forward(x, params))

    assert out.shape == (2, OUT)
    if not jnp.allclose(out, ref, atol=2e-3, rtol=2e-2):
        raise AssertionError("Pallas kernel output mismatches JAX reference")
    print("KERNEL_OK")
</pallas_src>

<mosaic_0001>
module attributes {stable_mosaic.version = 11 : i64} {
  func.func @cnn_nv_kernel(%arg0: memref<2x32x4xf32, #tpu.memory_space<vmem>>, %arg1: memref<4x32xbf16, #tpu.memory_space<vmem>>, %arg2: memref<1x32xf32, #tpu.memory_space<vmem>>, %arg3: memref<1x32x32xbf16, #tpu.memory_space<vmem>>, %arg4: memref<1x32x1xf32, #tpu.memory_space<vmem>>, %arg5: memref<32x32xbf16, #tpu.memory_space<vmem>>, %arg6: memref<1x32xf32, #tpu.memory_space<vmem>>, %arg7: memref<1x32x32xbf16, #tpu.memory_space<vmem>>, %arg8: memref<1x32x1xf32, #tpu.memory_space<vmem>>, %arg9: memref<2x512x512xbf16, #tpu.memory_space<any>>, %arg10: memref<1x512xf32, #tpu.memory_space<vmem>>, %arg11: memref<512x128xbf16, #tpu.memory_space<vmem>>, %arg12: memref<1x128xf32, #tpu.memory_space<vmem>>, %arg13: memref<2x128xf32, #tpu.memory_space<vmem>>, %arg14: memref<2x512x512xbf16, #tpu.memory_space<vmem>>, %arg15: memref<2x!tpu.dma_semaphore, #tpu.memory_space<semaphore_mem>>) attributes {dimension_semantics = [], scalar_prefetch = 0 : i64, scratch_operands = 2 : i64, tpu.core_type = #tpu.core_type<tc>} {
    %c0_i32 = arith.constant 0 : i32
    %c0_i32_0 = arith.constant 0 : i32
    %c0_i32_1 = arith.constant 0 : i32
    %c0_i32_2 = arith.constant 0 : i32
    %c0_i32_3 = arith.constant 0 : i32
    %0 = tpu.memref_slice %arg9[%c0_i32, %c0_i32_2, %c0_i32_3] : memref<2x512x512xbf16, #tpu.memory_space<any>> -> memref<1x512x512xbf16, #tpu.memory_space<any>>
    %1 = tpu.memref_squeeze %0 : memref<1x512x512xbf16, #tpu.memory_space<any>> -> memref<512x512xbf16, #tpu.memory_space<any>>
    %c0_i32_4 = arith.constant 0 : i32
    %c0_i32_5 = arith.constant 0 : i32
    %2 = tpu.memref_slice %arg14[%c0_i32_0, %c0_i32_4, %c0_i32_5] : memref<2x512x512xbf16, #tpu.memory_space<vmem>> -> memref<1x512x512xbf16, #tpu.memory_space<vmem>>
    %3 = tpu.memref_squeeze %2 : memref<1x512x512xbf16, #tpu.memory_space<vmem>> -> memref<512x512xbf16, #tpu.memory_space<vmem>>
    %4 = tpu.memref_slice %arg15[%c0_i32_1] : memref<2x!tpu.dma_semaphore, #tpu.memory_space<semaphore_mem>> -> memref<1x!tpu.dma_semaphore, #tpu.memory_space<semaphore_mem>>
    %5 = tpu.memref_squeeze %4 : memref<1x!tpu.dma_semaphore, #tpu.memory_space<semaphore_mem>> -> memref<!tpu.dma_semaphore, #tpu.memory_space<semaphore_mem>>
    tpu.enqueue_dma source(%1 : memref<512x512xbf16, #tpu.memory_space<any>>) target(%3 : memref<512x512xbf16, #tpu.memory_space<vmem>>) target_semaphore(%5 : memref<!tpu.dma_semaphore, #tpu.memory_space<semaphore_mem>>)
    %c1_i32 = arith.constant 1 : i32
    %c1_i32_6 = arith.constant 1 : i32
    %c1_i32_7 = arith.constant 1 : i32
    %c0_i32_8 = arith.constant 0 : i32
    %c0_i32_9 = arith.constant 0 : i32
    %6 = tpu.memref_slice %arg9[%c1_i32, %c0_i32_8, %c0_i32_9] : memref<2x512x512xbf16, #tpu.memory_space<any>> -> memref<1x512x512xbf16, #tpu.memory_space<any>>
    %7 = tpu.memref_squeeze %6 : memref<1x512x512xbf16, #tpu.memory_space<any>> -> memref<512x512xbf16, #tpu.memory_space<any>>
    %c0_i32_10 = arith.constant 0 : i32
    %c0_i32_11 = arith.constant 0 : i32
    %8 = tpu.memref_slice %arg14[%c1_i32_6, %c0_i32_10, %c0_i32_11] : memref<2x512x512xbf16, #tpu.memory_space<vmem>> -> memref<1x512x512xbf16, #tpu.memory_space<vmem>>
    %9 = tpu.memref_squeeze %8 : memref<1x512x512xbf16, #tpu.memory_space<vmem>> -> memref<512x512xbf16, #tpu.memory_space<vmem>>
    %10 = tpu.memref_slice %arg15[%c1_i32_7] : memref<2x!tpu.dma_semaphore, #tpu.memory_space<semaphore_mem>> -> memref<1x!tpu.dma_semaphore, #tpu.memory_space<semaphore_mem>>
    %11 = tpu.memref_squeeze %10 : memref<1x!tpu.dma_semaphore, #tpu.memory_space<semaphore_mem>> -> memref<!tpu.dma_semaphore, #tpu.memory_space<semaphore_mem>>
    tpu.enqueue_dma source(%7 : memref<512x512xbf16, #tpu.memory_space<any>>) target(%9 : memref<512x512xbf16, #tpu.memory_space<vmem>>) target_semaphore(%11 : memref<!tpu.dma_semaphore, #tpu.memory_space<semaphore_mem>>)
    %c0 = arith.constant 0 : index
    %c0_12 = arith.constant 0 : index
    %c0_13 = arith.constant 0 : index
    %12 = vector.load %arg0[%c0, %c0_12, %c0_13] : memref<2x32x4xf32, #tpu.memory_space<vmem>>, vector<2x32x4xf32>
    %13 = vector.shape_cast %12 : vector<2x32x4xf32> to vector<64x4xf32>
    %14 = arith.truncf %13 : vector<64x4xf32> to vector<64x4xbf16>
    %c0_14 = arith.constant 0 : index
    %c0_15 = arith.constant 0 : index
    %15 = vector.load %arg1[%c0_14, %c0_15] : memref<4x32xbf16, #tpu.memory_space<vmem>>, vector<4x32xbf16>
    %cst = arith.constant dense<0.000000e+00> : vector<64x32xf32>
    %16 = tpu.matmul %14, %15, %cst {dimension_numbers = #tpu.dot_dimension_numbers<[1], [0], [0], [1], [0, 0, 1, 1], [], []>} : vector<64x4xbf16>, vector<4x32xbf16>, vector<64x32xf32> -> vector<64x32xf32>
    %c0_16 = arith.constant 0 : index
    %c0_17 = arith.constant 0 : index
    %17 = vector.load %arg2[%c0_16, %c0_17] : memref<1x32xf32, #tpu.memory_space<vmem>>, vector<1x32xf32>
    %18 = vector.broadcast %17 : vector<1x32xf32> to vector<64x32xf32>
    %19 = arith.addf %16, %18 : vector<64x32xf32>
    %cst_18 = arith.constant 0.000000e+00 : f32
    %20 = vector.broadcast %cst_18 : f32 to vector<64x32xf32>
    %21 = arith.maximumf %19, %20 : vector<64x32xf32>
    %22 = vector.shape_cast %21 : vector<64x32xf32> to vector<2x32x32xf32>
    %c0_19 = arith.constant 0 : index
    %c0_20 = arith.constant 0 : index
    %c0_21 = arith.constant 0 : index
    %23 = vector.load %arg3[%c0_19, %c0_20, %c0_21] : memref<1x32x32xbf16, #tpu.memory_space<vmem>>, vector<1x32x32xbf16>
    %24 = vector.shape_cast %23 : vector<1x32x32xbf16> to vector<1x32x32xbf16>
    %25 = vector.broadcast %24 : vector<1x32x32xbf16> to vector<2x32x32xbf16>
    %26 = arith.truncf %22 : vector<2x32x32xf32> to vector<2x32x32xbf16>
    "tpu.trace_start"() <{level = 10 : i32, message = "bch,bhw->bcw"}> : () -> ()
    %cst_22 = arith.constant dense<0.000000e+00> : vector<2x32x32xf32>
    %27 = tpu.matmul %25, %26, %cst_22 {dimension_numbers = #tpu.dot_dimension_numbers<[2], [1], [1], [2], [0, 0, 0, 1, 1, 2], [0], [0]>} : vector<2x32x32xbf16>, vector<2x32x32xbf16>, vector<2x32x32xf32> -> vector<2x32x32xf32>
    "tpu.trace_stop"() : () -> ()
    %c0_23 = arith.constant 0 : index
    %c0_24 = arith.constant 0 : index
    %c0_25 = arith.constant 0 : index
    %28 = vector.load %arg4[%c0_23, %c0_24, %c0_25] : memref<1x32x1xf32, #tpu.memory_space<vmem>>, vector<1x32x1xf32>
    %29 = vector.broadcast %28 : vector<1x32x1xf32> to vector<2x32x32xf32>
    %30 = arith.addf %27, %29 : vector<2x32x32xf32>
    %cst_26 = arith.constant 0.000000e+00 : f32
    %31 = vector.broadcast %cst_26 : f32 to vector<2x32x32xf32>
    %32 = arith.maximumf %30, %31 : vector<2x32x32xf32>
    %33 = vector.shape_cast %32 : vector<2x32x32xf32> to vector<64x32xf32>
    %34 = arith.truncf %33 : vector<64x32xf32> to vector<64x32xbf16>
    %c0_27 = arith.constant 0 : index
    %c0_28 = arith.constant 0 : index
    %35 = vector.load %arg5[%c0_27, %c0_28] : memref<32x32xbf16, #tpu.memory_space<vmem>>, vector<32x32xbf16>
    %cst_29 = arith.constant dense<0.000000e+00> : vector<64x32xf32>
    %36 = tpu.matmul %34, %35, %cst_29 {dimension_numbers = #tpu.dot_dimension_numbers<[1], [0], [0], [1], [0, 0, 1, 1], [], []>} : vector<64x32xbf16>, vector<32x32xbf16>, vector<64x32xf32> -> vector<64x32xf32>
    %c0_30 = arith.constant 0 : index
    %c0_31 = arith.constant 0 : index
    %37 = vector.load %arg6[%c0_30, %c0_31] : memref<1x32xf32, #tpu.memory_space<vmem>>, vector<1x32xf32>
    %38 = vector.broadcast %37 : vector<1x32xf32> to vector<64x32xf32>
    %39 = arith.addf %36, %38 : vector<64x32xf32>
    %cst_32 = arith.constant 0.000000e+00 : f32
    %40 = vector.broadcast %cst_32 : f32 to vector<64x32xf32>
    %41 = arith.maximumf %39, %40 : vector<64x32xf32>
    %42 = vector.shape_cast %41 : vector<64x32xf32> to vector<2x32x32xf32>
    %c0_33 = arith.constant 0 : index
    %c0_34 = arith.constant 0 : index
    %c0_35 = arith.constant 0 : index
    %43 = vector.load %arg7[%c0_33, %c0_34, %c0_35] : memref<1x32x32xbf16, #tpu.memory_space<vmem>>, vector<1x32x32xbf16>
    %44 = vector.shape_cast %43 : vector<1x32x32xbf16> to vector<1x32x32xbf16>
    %45 = vector.broadcast %44 : vector<1x32x32xbf16> to vector<2x32x32xbf16>
    %46 = arith.truncf %42 : vector<2x32x32xf32> to vector<2x32x32xbf16>
    "tpu.trace_start"() <{level = 10 : i32, message = "bch,bhw->bcw"}> : () -> ()
    %cst_36 = arith.constant dense<0.000000e+00> : vector<2x32x32xf32>
    %47 = tpu.matmul %45, %46, %cst_36 {dimension_numbers = #tpu.dot_dimension_numbers<[2], [1], [1], [2], [0, 0, 0, 1, 1, 2], [0], [0]>} : vector<2x32x32xbf16>, vector<2x32x32xbf16>, vector<2x32x32xf32> -> vector<2x32x32xf32>
    "tpu.trace_stop"() : () -> ()
    %c0_37 = arith.constant 0 : index
    %c0_38 = arith.constant 0 : index
    %c0_39 = arith.constant 0 : index
    %48 = vector.load %arg8[%c0_37, %c0_38, %c0_39] : memref<1x32x1xf32, #tpu.memory_space<vmem>>, vector<1x32x1xf32>
    %49 = vector.broadcast %48 : vector<1x32x1xf32> to vector<2x32x32xf32>
    %50 = arith.addf %47, %49 : vector<2x32x32xf32>
    %cst_40 = arith.constant 0.000000e+00 : f32
    %51 = vector.broadcast %cst_40 : f32 to vector<2x32x32xf32>
    %52 = arith.maximumf %50, %51 : vector<2x32x32xf32>
    %53 = vector.shape_cast %52 : vector<2x32x32xf32> to vector<2x1024xf32>
    %54 = arith.truncf %53 : vector<2x1024xf32> to vector<2x1024xbf16>
    %c0_i32_41 = arith.constant 0 : i32
    %c0_i32_42 = arith.constant 0 : i32
    %c0_i32_43 = arith.constant 0 : i32
    %c0_i32_44 = arith.constant 0 : i32
    %c0_i32_45 = arith.constant 0 : i32
    %55 = tpu.memref_slice %arg9[%c0_i32_41, %c0_i32_44, %c0_i32_45] : memref<2x512x512xbf16, #tpu.memory_space<any>> -> memref<1x512x512xbf16, #tpu.memory_space<any>>
    %56 = tpu.memref_squeeze %55 : memref<1x512x512xbf16, #tpu.memory_space<any>> -> memref<512x512xbf16, #tpu.memory_space<any>>
    %c0_i32_46 = arith.constant 0 : i32
    %c0_i32_47 = arith.constant 0 : i32
    %57 = tpu.memref_slice %arg14[%c0_i32_42, %c0_i32_46, %c0_i32_47] : memref<2x512x512xbf16, #tpu.memory_space<vmem>> -> memref<1x512x512xbf16, #tpu.memory_space<vmem>>
    %58 = tpu.memref_squeeze %57 : memref<1x512x512xbf16, #tpu.memory_space<vmem>> -> memref<512x512xbf16, #tpu.memory_space<vmem>>
    %59 = tpu.memref_slice %arg15[%c0_i32_43] : memref<2x!tpu.dma_semaphore, #tpu.memory_space<semaphore_mem>> -> memref<1x!tpu.dma_semaphore, #tpu.memory_space<semaphore_mem>>
    %60 = tpu.memref_squeeze %59 : memref<1x!tpu.dma_semaphore, #tpu.memory_space<semaphore_mem>> -> memref<!tpu.dma_semaphore, #tpu.memory_space<semaphore_mem>>
    tpu.wait_dma2 semaphore(%60 : memref<!tpu.dma_semaphore, #tpu.memory_space<semaphore_mem>>) src(%56 : memref<512x512xbf16, #tpu.memory_space<any>>) dst(%58 : memref<512x512xbf16, #tpu.memory_space<vmem>>)
    %61 = vector.extract_strided_slice %54 {offsets = [0, 0], sizes = [2, 512], strides = [1, 1]} : vector<2x1024xbf16> to vector<2x512xbf16>
    %c0_48 = arith.constant 0 : index
    %c0_49 = arith.constant 0 : index
    %c0_50 = arith.constant 0 : index
    %62 = vector.load %arg14[%c0_48, %c0_49, %c0_50] : memref<2x512x512xbf16, #tpu.memory_space<vmem>>, vector<1x512x512xbf16>
    %63 = vector.shape_cast %62 : vector<1x512x512xbf16> to vector<512x512xbf16>
    %cst_51 = arith.constant dense<0.000000e+00> : vector<2x512xf32>
    %64 = tpu.matmul %61, %63, %cst_51 {dimension_numbers = #tpu.dot_dimension_numbers<[1], [0], [0], [1], [0, 0, 1, 1], [], []>} : vector<2x512xbf16>, vector<512x512xbf16>, vector<2x512xf32> -> vector<2x512xf32>
    %c1_i32_52 = arith.constant 1 : i32
    %c1_i32_53 = arith.constant 1 : i32
    %c1_i32_54 = arith.constant 1 : i32
    %c0_i32_55 = arith.constant 0 : i32
    %c0_i32_56 = arith.constant 0 : i32
    %65 = tpu.memref_slice %arg9[%c1_i32_52, %c0_i32_55, %c0_i32_56] : memref<2x512x512xbf16, #tpu.memory_space<any>> -> memref<1x512x512xbf16, #tpu.memory_space<any>>
    %66 = tpu.memref_squeeze %65 : memref<1x512x512xbf16, #tpu.memory_space<any>> -> memref<512x512xbf16, #tpu.memory_space<any>>
    %c0_i32_57 = arith.constant 0 : i32
    %c0_i32_58 = arith.constant 0 : i32
    %67 = tpu.memref_slice %arg14[%c1_i32_53, %c0_i32_57, %c0_i32_58] : memref<2x512x512xbf16, #tpu.memory_space<vmem>> -> memref<1x512x512xbf16, #tpu.memory_space<vmem>>
    %68 = tpu.memref_squeeze %67 : memref<1x512x512xbf16, #tpu.memory_space<vmem>> -> memref<512x512xbf16, #tpu.memory_space<vmem>>
    %69 = tpu.memref_slice %arg15[%c1_i32_54] : memref<2x!tpu.dma_semaphore, #tpu.memory_space<semaphore_mem>> -> memref<1x!tpu.dma_semaphore, #tpu.memory_space<semaphore_mem>>
    %70 = tpu.memref_squeeze %69 : memref<1x!tpu.dma_semaphore, #tpu.memory_space<semaphore_mem>> -> memref<!tpu.dma_semaphore, #tpu.memory_space<semaphore_mem>>
    tpu.wait_dma2 semaphore(%70 : memref<!tpu.dma_semaphore, #tpu.memory_space<semaphore_mem>>) src(%66 : memref<512x512xbf16, #tpu.memory_space<any>>) dst(%68 : memref<512x512xbf16, #tpu.memory_space<vmem>>)
    %71 = vector.extract_strided_slice %54 {offsets = [0, 512], sizes = [2, 512], strides = [1, 1]} : vector<2x1024xbf16> to vector<2x512xbf16>
    %c1 = arith.constant 1 : index
    %c0_59 = arith.constant 0 : index
    %c0_60 = arith.constant 0 : index
    %72 = vector.load %arg14[%c1, %c0_59, %c0_60] : memref<2x512x512xbf16, #tpu.memory_space<vmem>>, vector<1x512x512xbf16>
    %73 = vector.shape_cast %72 : vector<1x512x512xbf16> to vector<512x512xbf16>
    %cst_61 = arith.constant dense<0.000000e+00> : vector<2x512xf32>
    %74 = tpu.matmul %71, %73, %cst_61 {dimension_numbers = #tpu.dot_dimension_numbers<[1], [0], [0], [1], [0, 0, 1, 1], [], []>} : vector<2x512xbf16>, vector<512x512xbf16>, vector<2x512xf32> -> vector<2x512xf32>
    %75 = arith.addf %64, %74 : vector<2x512xf32>
    %c0_62 = arith.constant 0 : index
    %c0_63 = arith.constant 0 : index
    %76 = vector.load %arg10[%c0_62, %c0_63] : memref<1x512xf32, #tpu.memory_space<vmem>>, vector<1x512xf32>
    %77 = vector.broadcast %76 : vector<1x512xf32> to vector<2x512xf32>
    %78 = arith.addf %75, %77 : vector<2x512xf32>
    %79 = arith.truncf %78 : vector<2x512xf32> to vector<2x512xbf16>
    %c0_64 = arith.constant 0 : index
    %c0_65 = arith.constant 0 : index
    %80 = vector.load %arg11[%c0_64, %c0_65] : memref<512x128xbf16, #tpu.memory_space<vmem>>, vector<512x128xbf16>
    %cst_66 = arith.constant dense<0.000000e+00> : vector<2x128xf32>
    %81 = tpu.matmul %79, %80, %cst_66 {dimension_numbers = #tpu.dot_dimension_numbers<[1], [0], [0], [1], [0, 0, 1, 1], [], []>} : vector<2x512xbf16>, vector<512x128xbf16>, vector<2x128xf32> -> vector<2x128xf32>
    %c0_67 = arith.constant 0 : index
    %c0_68 = arith.constant 0 : index
    %82 = vector.load %arg12[%c0_67, %c0_68] : memref<1x128xf32, #tpu.memory_space<vmem>>, vector<1x128xf32>
    %83 = vector.broadcast %82 : vector<1x128xf32> to vector<2x128xf32>
    %84 = arith.addf %81, %83 : vector<2x128xf32>
    %c0_69 = arith.constant 0 : index
    %c0_70 = arith.constant 0 : index
    %85 = vector.load %arg13[%c0_69, %c0_70] : memref<2x128xf32, #tpu.memory_space<vmem>>, vector<2x128xf32>
    tpu.vector_store %arg13[%c0_69, %c0_70], %84 {strides = array<i32>} : memref<2x128xf32, #tpu.memory_space<vmem>>, vector<2x128xf32>,
    return
  }
}

</mosaic_0001>

<llo_original>
// kernel: cnn_nv_forward.1
$region0: #{cnn_nv_forward.1}
  #allocation0 [shape = 'u32[]', space=smem, size = 0x4, offset = 0x4, fixed_abs, tag = 'smem constant byte address 0x4 - core index']
  #allocation1 [shape = 'u32[144,128]{1,0:T(1,128)}', space=vmem, size = 0x12000, scoped, tag = 'internal scratch']
  #allocation2 [shape = 'bf16[2,512,512]{2,1,0:T(8,128)(2,1)}', space=vmem, size = 0x100000, scoped, tag = 'scratch operand']
  #allocation3 [shape = 's32[2]{0}', space=sflag, size = 0x8, scoped, tag = 'scratch operand']
  #allocation14 [shape = 's32[]', space=sflag, size = 0x4, offset = 0, fixed_abs, tag = 'sflag constant byte address 0x0 - dummy sync flag']
  #allocation15 [shape = 's32[]', space=sflag, size = 0x4, offset = 0, fixed_abs, tag = 'sflag constant byte address 0x0 - dummy sync flag']
  #allocation16 [shape = 'u32[]', space=smem, size = 0x4, offset = 0x44, fixed_abs, tag = 'smem constant byte address 0x44 - assertion arg 0']
  #allocation17 [shape = 'u32[]', space=smem, size = 0x4, offset = 0x48, fixed_abs, tag = 'smem constant byte address 0x48 - assertion arg 1']
  #allocation18 [shape = 's32[]', space=sflag, size = 0x4, offset = 0, fixed_abs, tag = 'sflag constant byte address 0x0 - dummy sync flag']
  #allocation19 [shape = 's32[]', space=sflag, size = 0x4, offset = 0, fixed_abs, tag = 'sflag constant byte address 0x0 - dummy sync flag']
  %s0 = inlined_call_operand.vmem [shape: f32[2,32,4], index: 0, kind: input, shape index: {}]
  %s1 = inlined_call_operand.vmem [shape: bf16[4,32], index: 1, kind: input, shape index: {}]
  %s2 = inlined_call_operand.vmem [shape: f32[1,32], index: 2, kind: input, shape index: {}]
  %s3 = inlined_call_operand.vmem [shape: bf16[1,32,32], index: 3, kind: input, shape index: {}]
  %s4 = inlined_call_operand.vmem [shape: f32[1,32,1], index: 4, kind: input, shape index: {}]
  %s5 = inlined_call_operand.hbm [shape: bf16[32,32], index: 5, kind: input, shape index: {}]
  %s6 = inlined_call_operand.hbm [shape: f32[1,32], index: 6, kind: input, shape index: {}]
  %s7 = inlined_call_operand.hbm [shape: bf16[1,32,32], index: 7, kind: input, shape index: {}]
  %s8 = inlined_call_operand.vmem [shape: f32[1,32,1], index: 8, kind: input, shape index: {}]
  %s9 = inlined_call_operand.hbm [shape: bf16[2,512,512], index: 9, kind: input, shape index: {}]
  %s10 = inlined_call_operand.hbm [shape: f32[1,512], index: 10, kind: input, shape index: {}]
  %s11 = inlined_call_operand.vmem [shape: bf16[512,128], index: 11, kind: input, shape index: {}]
  %s12 = inlined_call_operand.hbm [shape: f32[1,128], index: 12, kind: input, shape index: {}]
  %s13 = inlined_call_operand.hbm [shape: f32[2,128], index: 13, kind: output, shape index: {}]
  %s14 = sld [smem:[#allocation0]]
  $region86: #{cnn_nv_forward.1} parent=0
    _
  %s16 = ssub.s32 1, %s14
  %s17 = scalar_select 0, %s16, %s14
  $region1: #{cnn_nv_forward.1} parent=0
    #allocation4 [shape = 'u8[8192]{0}', space=vmem, size = 0x2000, scoped, tag = 'input window, operand 5, single buffered']
    #allocation5 [shape = 's32[1]{0}', space=sflag, size = 0x4, scoped, tag = 'scoped memory for cnn_nv_forward.1']
    #allocation6 [shape = 's32[1]{0}', space=sflag, size = 0x4, scoped, tag = 'scoped memory for cnn_nv_forward.1']
    #allocation7 [shape = 'u8[512]{0}', space=vmem, size = 0x400, scoped, tag = 'input window, operand 6, single buffered']
    #allocation8 [shape = 's32[1]{0}', space=sflag, size = 0x4, scoped, tag = 'scoped memory for cnn_nv_forward.1']
    #allocation9 [shape = 'u8[8192]{0}', space=vmem, size = 0x2000, scoped, tag = 'input window, operand 7, single buffered']
    #allocation10 [shape = 'u8[2048]{0}', space=vmem, size = 0x800, scoped, tag = 'input window, operand 10, single buffered']
    #allocation11 [shape = 's32[1]{0}', space=sflag, size = 0x4, scoped, tag = 'scoped memory for cnn_nv_forward.1']
    #allocation12 [shape = 'u8[512]{0}', space=vmem, size = 0x400, scoped, tag = 'input window, operand 12, single buffered']
    #allocation13 [shape = 'u8[1024]{0}', space=vmem, size = 0x400, scoped, tag = 'output window, operand 0, single buffered']
    %18 = vsyncpa [#allocation5], 0
    %19 = vsyncpa [#allocation8], 0
    %20 = vsyncpa [#allocation11], 0
    %21 = vsyncpa [#allocation6], 0
    // Predicated region
    $region2: #{cnn_nv_forward.1} parent=1 // pred_check
      _
    $region3: #{cnn_nv_forward.1} parent=1 // pred_check_branch
      %23 = sbr.rel (0) target = $region5
    $region4: #{cnn_nv_forward.1} parent=1 // pred_region
      _
    $region5: #{cnn_nv_forward.1} parent=1 // pred_fallthru
      _
    // Predicated region
    $region6: #{cnn_nv_forward.1} parent=1 // pred_check
      _
    $region7: #{cnn_nv_forward.1} parent=1 // pred_check_branch
      %25 = sbr.rel (0) target = $region9
    $region8: #{cnn_nv_forward.1} parent=1 // pred_region
      _
    $region9: #{cnn_nv_forward.1} parent=1 // pred_fallthru
      _
    // Predicated region
    $region10: #{cnn_nv_forward.1} parent=1 // pred_check
      _
    $region11: #{cnn_nv_forward.1} parent=1 // pred_check_branch
      %27 = sbr.rel (0) target = $region13
    $region12: #{cnn_nv_forward.1} parent=1 // pred_region
      _
    $region13: #{cnn_nv_forward.1} parent=1 // pred_fallthru
      _
    // Predicated region
    $region14: #{cnn_nv_forward.1} parent=1 // pred_check
      _
    $region15: #{cnn_nv_forward.1} parent=1 // pred_check_branch
      %29 = sbr.rel (0) target = $region17
    $region16: #{cnn_nv_forward.1} parent=1 // pred_region
      _
    $region17: #{cnn_nv_forward.1} parent=1 // pred_fallthru
      _
    // Predicated region
    $region18: #{cnn_nv_forward.1} parent=1 // pred_check
      _
    $region19: #{cnn_nv_forward.1} parent=1 // pred_check_branch
      %31 = sbr.rel (0) target = $region21
    $region20: #{cnn_nv_forward.1} parent=1 // pred_region
      _
    $region21: #{cnn_nv_forward.1} parent=1 // pred_fallthru
      _
    // Predicated region
    $region22: #{cnn_nv_forward.1} parent=1 // pred_check
      _
    $region23: #{cnn_nv_forward.1} parent=1 // pred_check_branch
      %33 = sbr.rel (0) target = $region25
    $region24: #{cnn_nv_forward.1} parent=1 // pred_region
      %s35 = ssub.s32 256, 256
      %36 = vsyncadd [#allocation5], %s35
      %s37 = sshll.u32 [#allocation4], 4
      %s38 = int_to_ptr.vmem [resolvable:$true] %s37
      %43 = dma.hbm_to_vmem [thread:$0]  %s5, 256, %s38, [#allocation5], 64, 64, 4
    $region25: #{cnn_nv_forward.1} parent=1 // pred_fallthru
      _
    // Predicated region
    $region26: #{cnn_nv_forward.1} parent=1 // pred_check
      _
    $region27: #{cnn_nv_forward.1} parent=1 // pred_check_branch
      %45 = sbr.rel (0) target = $region29
    $region28: #{cnn_nv_forward.1} parent=1 // pred_region
      %s47 = ssub.s32 16, 16
      %48 = vsyncadd [#allocation8], %s47
      %s50 = sshll.u32 [#allocation7], 4
      %s51 = int_to_ptr.vmem [resolvable:$true] %s50
      %53 = dma.hbm_to_vmem [thread:$0]  %s6, 16, %s51, [#allocation8]
    $region29: #{cnn_nv_forward.1} parent=1 // pred_fallthru
      _
    // Predicated region
    $region30: #{cnn_nv_forward.1} parent=1 // pred_check
      _
    $region31: #{cnn_nv_forward.1} parent=1 // pred_check_branch
      %55 = sbr.rel (0) target = $region33
    $region32: #{cnn_nv_forward.1} parent=1 // pred_region
      %s57 = ssub.s32 256, 256
      %58 = vsyncadd [#allocation8], %s57
      %s59 = sshll.u32 [#allocation9], 4
      %s60 = int_to_ptr.vmem [resolvable:$true] %s59
      %65 = dma.hbm_to_vmem [thread:$0]  %s7, 256, %s60, [#allocation8], 64, 64, 4
    $region33: #{cnn_nv_forward.1} parent=1 // pred_fallthru
      _
    // Predicated region
    $region34: #{cnn_nv_forward.1} parent=1 // pred_check
      _
    $region35: #{cnn_nv_forward.1} parent=1 // pred_check_branch
      %67 = sbr.rel (0) target = $region37
    $region36: #{cnn_nv_forward.1} parent=1 // pred_region
      _
    $region37: #{cnn_nv_forward.1} parent=1 // pred_fallthru
      _
    // Predicated region
    $region38: #{cnn_nv_forward.1} parent=1 // pred_check
      _
    $region39: #{cnn_nv_forward.1} parent=1 // pred_check_branch
      %69 = sbr.rel (0) target = $region41
    $region40: #{cnn_nv_forward.1} parent=1 // pred_region
      %s71 = ssub.s32 64, 64
      %72 = vsyncadd [#allocation11], %s71
      %s74 = sshll.u32 [#allocation10], 4
      %s75 = int_to_ptr.vmem [resolvable:$true] %s74
      %77 = dma.hbm_to_vmem [thread:$0]  %s10, 64, %s75, [#allocation11]
    $region41: #{cnn_nv_forward.1} parent=1 // pred_fallthru
      _
    // Predicated region
    $region42: #{cnn_nv_forward.1} parent=1 // pred_check
      _
    $region43: #{cnn_nv_forward.1} parent=1 // pred_check_branch
      %79 = sbr.rel (0) target = $region45
    $region44: #{cnn_nv_forward.1} parent=1 // pred_region
      _
    $region45: #{cnn_nv_forward.1} parent=1 // pred_fallthru
      _
    // Predicated region
    $region46: #{cnn_nv_forward.1} parent=1 // pred_check
      _
    $region47: #{cnn_nv_forward.1} parent=1 // pred_check_branch
      %81 = sbr.rel (0) target = $region49
    $region48: #{cnn_nv_forward.1} parent=1 // pred_region
      %s83 = ssub.s32 16, 16
      %84 = vsyncadd [#allocation11], %s83
      %s86 = sshll.u32 [#allocation12], 4
      %s87 = int_to_ptr.vmem [resolvable:$true] %s86
      %89 = dma.hbm_to_vmem [thread:$0]  %s12, 16, %s87, [#allocation11]
    $region49: #{cnn_nv_forward.1} parent=1 // pred_fallthru
      _
    // Predicated region
    $region50: #{cnn_nv_forward.1} parent=1 // pred_check
      _
    $region51: #{cnn_nv_forward.1} parent=1 // pred_check_branch
      %91 = sbr.rel (0) target = $region53
    $region52: #{cnn_nv_forward.1} parent=1 // pred_region
      %92 = dma.done [#allocation5], 256
    $region53: #{cnn_nv_forward.1} parent=1 // pred_fallthru
      _
    // Predicated region
    $region54: #{cnn_nv_forward.1} parent=1 // pred_check
      _
    $region55: #{cnn_nv_forward.1} parent=1 // pred_check_branch
      %94 = sbr.rel (0) target = $region57
    $region56: #{cnn_nv_forward.1} parent=1 // pred_region
      %95 = dma.done [#allocation8], 16
    $region57: #{cnn_nv_forward.1} parent=1 // pred_fallthru
      _
    // Predicated region
    $region58: #{cnn_nv_forward.1} parent=1 // pred_check
      _
    $region59: #{cnn_nv_forward.1} parent=1 // pred_check_branch
      %97 = sbr.rel (0) target = $region61
    $region60: #{cnn_nv_forward.1} parent=1 // pred_region
      %98 = dma.done [#allocation8], 256
    $region61: #{cnn_nv_forward.1} parent=1 // pred_fallthru
      _
    // Predicated region
    $region62: #{cnn_nv_forward.1} parent=1 // pred_check
      _
    $region63: #{cnn_nv_forward.1} parent=1 // pred_check_branch
      %100 = sbr.rel (0) target = $region65
    $region64: #{cnn_nv_forward.1} parent=1 // pred_region
      %101 = dma.done [#allocation11], 64
    $region65: #{cnn_nv_forward.1} parent=1 // pred_fallthru
      _
    // Predicated region
    $region66: #{cnn_nv_forward.1} parent=1 // pred_check
      _
    $region67: #{cnn_nv_forward.1} parent=1 // pred_check_branch
      %103 = sbr.rel (0) target = $region69
    $region68: #{cnn_nv_forward.1} parent=1 // pred_region
      %104 = dma.done [#allocation11], 16
    $region69: #{cnn_nv_forward.1} parent=1 // pred_fallthru
      _
    // Predicated region
    $region70: #{cnn_nv_forward.1} parent=1 // pred_check
      _
    $region71: #{cnn_nv_forward.1} parent=1 // pred_check_branch
      %107 = sbr.rel target = $region73
    $region72: #{cnn_nv_forward.1} parent=1 // pred_region
      %108 = sst [smem:[#allocation16]] [#allocation15]
      %109 = sst [smem:[#allocation17]] [#allocation14]
    $region73: #{cnn_nv_forward.1} parent=1 // pred_fallthru
      _
    %111 = shalt.err (0)
    %s113 = sshll.u32 [#allocation2], 4
    %s114 = int_to_ptr.vmem [resolvable:$true] %s113
    %116 = dma.hbm_to_vmem [thread:$0]  %s9, 16384, %s114, [#allocation3]
    %s117 = scalar_lea.hbm %s9, 16384
    %s118 = scalar_lea.vmem [#allocation2], 1024
    %s119 = scalar_lea.sflag [#allocation3], 1
    // Predicated region
    $region74: #{cnn_nv_forward.1} parent=1 // pred_check
      _
    $region75: #{cnn_nv_forward.1} parent=1 // pred_check_branch
      %121 = sbr.rel target = $region77
    $region76: #{cnn_nv_forward.1} parent=1 // pred_region
      %122 = sst [smem:[#allocation16]] [#allocation19]
      %123 = sst [smem:[#allocation17]] [#allocation18]
    $region77: #{cnn_nv_forward.1} parent=1 // pred_fallthru
      _
    %125 = shalt.err (0)
    %s127 = sshll.u32 %s118, 4
    %s128 = int_to_ptr.vmem [resolvable:$true] %s127
    %130 = dma.hbm_to_vmem [thread:$0]  %s117, 16384, %s128, %s119
    %v131 = vld [vmem:[%s0] sm:$0xff]
    %v132 = vld [vmem:[%s0 + $0x8] sm:$0xff]
    %v133 = vld [vmem:[%s0 + $0x10] sm:$0xff]
    %v134 = vld [vmem:[%s0 + $0x18] sm:$0xff]
    %v135 = vld [vmem:[%s0 + $0x20] sm:$0xff]
    %v136 = vld [vmem:[%s0 + $0x28] sm:$0xff]
    %v137 = vld [vmem:[%s0 + $0x30] sm:$0xff]
    %v138 = vld [vmem:[%s0 + $0x38] sm:$0xff]
    %v139 = vpack.c.bf16 %v132, %v131
    %v140 = vpack.c.bf16 %v134, %v133
    %v141 = vpack.c.bf16 %v136, %v135
    %v142 = vpack.c.bf16 %v138, %v137
    %v143 = vld [vmem:[%s1] sm:$0x3]
    %v144 = vld [vmem:[%s2] sm:$0x1]
    %v146 = vlaneseq
    %v147 = vshrl.u32 %v146, 7
    %v148 = vsub.s32 0, %v147
    %v149 = vrot.slane %v144, %v148
    %vm151 = vcmask 31744
    %v153 = vsel %vm151, %v139, 0
    %v156 = vsel %vm151, %v140, 0
    %v159 = vsel %vm151, %v141, 0
    %v162 = vsel %vm151, %v142, 0
    %vm164 = vcmask 1041408
    %v166 = vsel %vm164, %v143, 0
    %168 = vmatprep.subr.bf16.mxu0 0
    %169 = vmatpush1.bf16.msra.mxu0 0
    %170 = vmatprep.subr.bf16.mxu0 0
    %171 = vmatpush1.bf16.msra.mxu0 0
    %172 = vmatprep.subr.bf16.mxu0 0
    %173 = vmatpush1.bf16.msra.mxu0 0
    %174 = vmatprep.subr.bf16.mxu0 0
    %175 = vmatpush1.bf16.msra.mxu0 0
    %176 = vmatprep.subr.bf16.mxu0 0
    %177 = vmatpush1.bf16.msra.mxu0 0
    %178 = vmatprep.subr.bf16.mxu0 0
    %179 = vmatpush1.bf16.msra.mxu0 0
    %180 = vmatprep.subr.bf16.mxu0 0
    %181 = vmatpush1.bf16.msra.mxu0 0
    %182 = vmatprep.subr.bf16.mxu0 0
    %183 = vmatpush1.bf16.msra.mxu0 %v166
    %184 = vmatprep.subr.bf16.mxu0 0
    %185 = vmatpush2.bf16.msra.mxu0 0
    %186 = vmatprep.subr.bf16.mxu0 0
    %187 = vmatpush2.bf16.msra.mxu0 0
    %188 = vmatprep.subr.bf16.mxu0 0
    %189 = vmatpush2.bf16.msra.mxu0 0
    %190 = vmatprep.subr.bf16.mxu0 0
    %191 = vmatpush2.bf16.msra.mxu0 0
    %192 = vmatprep.subr.bf16.mxu0 0
    %193 = vmatpush2.bf16.msra.mxu0 0
    %194 = vmatprep.subr.bf16.mxu0 0
    %195 = vmatpush2.bf16.msra.mxu0 0
    %196 = vmatprep.subr.bf16.mxu0 0
    %197 = vmatpush2.bf16.msra.mxu0 0
    %198 = vmatprep.subr.bf16.mxu0 0
    %199 = vmatpush2.bf16.msra.mxu0 0
    %200 = vmatprep.mubr.bf16.mxu0 0
    %201 = vmatmul.mubr.bf16.gmra.mxu0 %v153
    %v202 = vpop.f32.mrf.mxu0
    %v203 = vadd.f32 %v149, %v202
    %v204 = vpop.f32.mrf.mxu0
    %v205 = vpop.f32.mrf.mxu0
    %v206 = vadd.f32 %v149, %v205
    %v207 = vpop.f32.mrf.mxu0
    %208 = vmatprep.mubr.bf16.mxu0 0
    %209 = vmatmul.mubr.bf16.gmra.mxu0 %v156
    %v210 = vpop.f32.mrf.mxu0
    %v211 = vadd.f32 %v149, %v210
    %v212 = vpop.f32.mrf.mxu0
    %v213 = vpop.f32.mrf.mxu0
    %v214 = vadd.f32 %v149, %v213
    %v215 = vpop.f32.mrf.mxu0
    %216 = vmatprep.mubr.bf16.mxu0 0
    %217 = vmatmul.mubr.bf16.gmra.mxu0 %v159
    %v218 = vpop.f32.mrf.mxu0
    %v219 = vadd.f32 %v149, %v218
    %v220 = vpop.f32.mrf.mxu0
    %v221 = vpop.f32.mrf.mxu0
    %v222 = vadd.f32 %v149, %v221
    %v223 = vpop.f32.mrf.mxu0
    %224 = vmatprep.mubr.bf16.mxu0 0
    %225 = vmatmul.mubr.bf16.gmra.mxu0 %v162
    %v226 = vpop.f32.mrf.mxu0
    %v227 = vadd.f32 %v149, %v226
    %v228 = vpop.f32.mrf.mxu0
    %v229 = vpop.f32.mrf.mxu0
    %v230 = vadd.f32 %v149, %v229
    %v231 = vpop.f32.mrf.mxu0
    %232 = vdwg.mxu0
    %v233 = vmax.f32 %v203, 0.0
    %v234 = vmax.f32 %v206, 0.0
    %v235 = vmax.f32 %v211, 0.0
    %v236 = vmax.f32 %v214, 0.0
    %v237 = vmax.f32 %v219, 0.0
    %v238 = vmax.f32 %v222, 0.0
    %v239 = vmax.f32 %v227, 0.0
    %v240 = vmax.f32 %v230, 0.0
    %v241 = vld [vmem:[%s3] sm:$0xf]
    %v242 = vld [vmem:[%s3 + $0x4] sm:$0xf]
    %v243 = vld [vmem:[%s3 + $0x8] sm:$0xf]
    %v244 = vld [vmem:[%s3 + $0xc] sm:$0xf]
    %v245 = vpack.c.bf16 %v234, %v233
    %v246 = vpack.c.bf16 %v236, %v235
    %v247 = vpack.c.bf16 %v238, %v237
    %v248 = vpack.c.bf16 %v240, %v239
    %v249 = vld [vmem:[%s4] sm:$0xff]
    %v250 = vld [vmem:[%s4 + $0x8] sm:$0xff]
    %v251 = vld [vmem:[%s4 + $0x10] sm:$0xff]
    %v252 = vld [vmem:[%s4 + $0x18] sm:$0xff]
    %254 = vset.pattern.permute.xlu0 0
    %255 = vperm.xlu0 %254, %v249
    %v256 = vpop.permute.xlu0 %255
    %259 = vset.pattern.permute.xlu0 0
    %260 = vperm.xlu0 %259, %v250
    %v261 = vpop.permute.xlu0 %260
    %264 = vset.pattern.permute.xlu0 0
    %265 = vperm.xlu0 %264, %v251
    %v266 = vpop.permute.xlu0 %265
    %269 = vset.pattern.permute.xlu0 0
    %270 = vperm.xlu0 %269, %v252
    %v271 = vpop.permute.xlu0 %270
    %v277 = vunpack.c.l.b16 %v241
    %v278 = vunpack.c.l.b16 %v242
    %v279 = vunpack.c.l.b16 %v243
    %v280 = vunpack.c.l.b16 %v244
    %v281 = vpack.c.b16 %v278, %v277
    %v282 = vpack.c.b16 %v280, %v279
    %vm283 = vcmask 261120
    %v285 = vsel %vm283, %v281, 0
    %v288 = vsel %vm283, %v282, 0
    %290 = vmatprep.subr.bf16.mxu0 0
    %291 = vmatpush1.bf16.msra.mxu0 0
    %292 = vmatprep.subr.bf16.mxu0 0
    %293 = vmatpush1.bf16.msra.mxu0 0
    %294 = vmatprep.subr.bf16.mxu0 0
    %295 = vmatpush1.bf16.msra.mxu0 0
    %296 = vmatprep.subr.bf16.mxu0 0
    %297 = vmatpush1.bf16.msra.mxu0 0
    %298 = vmatprep.subr.bf16.mxu0 0
    %299 = vmatpush1.bf16.msra.mxu0 0
    %300 = vmatprep.subr.bf16.mxu0 0
    %301 = vmatpush1.bf16.msra.mxu0 0
    %302 = vmatprep.subr.bf16.mxu0 0
    %303 = vmatpush1.bf16.msra.mxu0 %v246
    %304 = vmatprep.subr.bf16.mxu0 0
    %305 = vmatpush1.bf16.msra.mxu0 %v245
    %306 = vmatprep.subr.bf16.mxu0 0
    %307 = vmatpush2.bf16.msra.mxu0 0
    %308 = vmatprep.subr.bf16.mxu0 0
    %309 = vmatpush2.bf16.msra.mxu0 0
    %310 = vmatprep.subr.bf16.mxu0 0
    %311 = vmatpush2.bf16.msra.mxu0 0
    %312 = vmatprep.subr.bf16.mxu0 0
    %313 = vmatpush2.bf16.msra.mxu0 0
    %314 = vmatprep.subr.bf16.mxu0 0
    %315 = vmatpush2.bf16.msra.mxu0 0
    %316 = vmatprep.subr.bf16.mxu0 0
    %317 = vmatpush2.bf16.msra.mxu0 0
    %318 = vmatprep.subr.bf16.mxu0 0
    %319 = vmatpush2.bf16.msra.mxu0 0
    %320 = vmatprep.subr.bf16.mxu0 0
    %321 = vmatpush2.bf16.msra.mxu0 0
    %322 = vmatprep.mubr.bf16.mxu0 0
    %323 = vmatmul.mubr.bf16.gmra.mxu0 %v285
    %v324 = vpop.f32.mrf.mxu0
    %v325 = vadd.f32 %v256, %v324
    %v326 = vpop.f32.mrf.mxu0
    %v327 = vpop.f32.mrf.mxu0
    %v328 = vadd.f32 %v261, %v327
    %v329 = vpop.f32.mrf.mxu0
    %330 = vmatprep.mubr.bf16.mxu0 0
    %331 = vmatmul.mubr.bf16.gmra.mxu0 %v288
    %v332 = vpop.f32.mrf.mxu0
    %v333 = vadd.f32 %v266, %v332
    %v334 = vpop.f32.mrf.mxu0
    %v335 = vpop.f32.mrf.mxu0
    %v336 = vadd.f32 %v271, %v335
    %v337 = vpop.f32.mrf.mxu0
    %338 = vdwg.mxu0
    %339 = vmatprep.subr.bf16.mxu0 0
    %340 = vmatpush1.bf16.msra.mxu0 0
    %341 = vmatprep.subr.bf16.mxu0 0
    %342 = vmatpush1.bf16.msra.mxu0 0
    %343 = vmatprep.subr.bf16.mxu0 0
    %344 = vmatpush1.bf16.msra.mxu0 0
    %345 = vmatprep.subr.bf16.mxu0 0
    %346 = vmatpush1.bf16.msra.mxu0 0
    %347 = vmatprep.subr.bf16.mxu0 0
    %348 = vmatpush1.bf16.msra.mxu0 0
    %349 = vmatprep.subr.bf16.mxu0 0
    %350 = vmatpush1.bf16.msra.mxu0 0
    %351 = vmatprep.subr.bf16.mxu0 0
    %352 = vmatpush1.bf16.msra.mxu0 %v248
    %353 = vmatprep.subr.bf16.mxu0 0
    %354 = vmatpush1.bf16.msra.mxu0 %v247
    %355 = vmatprep.subr.bf16.mxu0 0
    %356 = vmatpush2.bf16.msra.mxu0 0
    %357 = vmatprep.subr.bf16.mxu0 0
    %358 = vmatpush2.bf16.msra.mxu0 0
    %359 = vmatprep.subr.bf16.mxu0 0
    %360 = vmatpush2.bf16.msra.mxu0 0
    %361 = vmatprep.subr.bf16.mxu0 0
    %362 = vmatpush2.bf16.msra.mxu0 0
    %363 = vmatprep.subr.bf16.mxu0 0
    %364 = vmatpush2.bf16.msra.mxu0 0
    %365 = vmatprep.subr.bf16.mxu0 0
    %366 = vmatpush2.bf16.msra.mxu0 0
    %367 = vmatprep.subr.bf16.mxu0 0
    %368 = vmatpush2.bf16.msra.mxu0 0
    %369 = vmatprep.subr.bf16.mxu0 0
    %370 = vmatpush2.bf16.msra.mxu0 0
    %371 = vmatprep.mubr.bf16.mxu0 0
    %372 = vmatmul.mubr.bf16.gmra.mxu0 %v285
    %v373 = vpop.f32.mrf.mxu0
    %v374 = vadd.f32 %v256, %v373
    %v375 = vpop.f32.mrf.mxu0
    %v376 = vpop.f32.mrf.mxu0
    %v377 = vadd.f32 %v261, %v376
    %v378 = vpop.f32.mrf.mxu0
    %379 = vmatprep.mubr.bf16.mxu0 0
    %380 = vmatmul.mubr.bf16.gmra.mxu0 %v288
    %v381 = vpop.f32.mrf.mxu0
    %v382 = vadd.f32 %v266, %v381
    %v383 = vpop.f32.mrf.mxu0
    %v384 = vpop.f32.mrf.mxu0
    %v385 = vadd.f32 %v271, %v384
    %v386 = vpop.f32.mrf.mxu0
    %387 = vdwg.mxu0
    %v388 = vmax.f32 %v325, 0.0
    %v389 = vmax.f32 %v328, 0.0
    %v390 = vmax.f32 %v333, 0.0
    %v391 = vmax.f32 %v336, 0.0
    %v392 = vmax.f32 %v374, 0.0
    %v393 = vmax.f32 %v377, 0.0
    %v394 = vmax.f32 %v382, 0.0
    %v395 = vmax.f32 %v385, 0.0
    %v396 = vpack.c.bf16 %v389, %v388
    %v397 = vpack.c.bf16 %v391, %v390
    %v398 = vpack.c.bf16 %v393, %v392
    %v399 = vpack.c.bf16 %v395, %v394
    %v400 = vld [vmem:[#allocation4] sm:$0xf]
    %v401 = vld [vmem:[#allocation4 + $0x4] sm:$0xf]
    %v402 = vld [vmem:[#allocation4 + $0x8] sm:$0xf]
    %v403 = vld [vmem:[#allocation4 + $0xc] sm:$0xf]
    %v404 = vld [vmem:[#allocation7] sm:$0x1]
    %v406 = vlaneseq
    %v407 = vshrl.u32 %v406, 7
    %v408 = vsub.s32 0, %v407
    %v409 = vrot.slane %v404, %v408
    %v415 = vunpack.c.l.b16 %v400
    %v416 = vunpack.c.l.b16 %v401
    %v417 = vunpack.c.l.b16 %v402
    %v418 = vunpack.c.l.b16 %v403
    %v419 = vpack.c.b16 %v416, %v415
    %v420 = vpack.c.b16 %v418, %v417
    %v424 = vsel %vm283, %v396, 0
    %v427 = vsel %vm283, %v397, 0
    %v430 = vsel %vm283, %v398, 0
    %v433 = vsel %vm283, %v399, 0
    %435 = vmatprep.subr.bf16.mxu0 0
    %436 = vmatpush1.bf16.msra.mxu0 0
    %437 = vmatprep.subr.bf16.mxu0 0
    %438 = vmatpush1.bf16.msra.mxu0 0
    %439 = vmatprep.subr.bf16.mxu0 0
    %440 = vmatpush1.bf16.msra.mxu0 0
    %441 = vmatprep.subr.bf16.mxu0 0
    %442 = vmatpush1.bf16.msra.mxu0 0
    %443 = vmatprep.subr.bf16.mxu0 0
    %444 = vmatpush1.bf16.msra.mxu0 0
    %445 = vmatprep.subr.bf16.mxu0 0
    %446 = vmatpush1.bf16.msra.mxu0 0
    %447 = vmatprep.subr.bf16.mxu0 0
    %448 = vmatpush1.bf16.msra.mxu0 %v420
    %449 = vmatprep.subr.bf16.mxu0 0
    %450 = vmatpush1.bf16.msra.mxu0 %v419
    %451 = vmatprep.subr.bf16.mxu0 0
    %452 = vmatpush2.bf16.msra.mxu0 0
    %453 = vmatprep.subr.bf16.mxu0 0
    %454 = vmatpush2.bf16.msra.mxu0 0
    %455 = vmatprep.subr.bf16.mxu0 0
    %456 = vmatpush2.bf16.msra.mxu0 0
    %457 = vmatprep.subr.bf16.mxu0 0
    %458 = vmatpush2.bf16.msra.mxu0 0
    %459 = vmatprep.subr.bf16.mxu0 0
    %460 = vmatpush2.bf16.msra.mxu0 0
    %461 = vmatprep.subr.bf16.mxu0 0
    %462 = vmatpush2.bf16.msra.mxu0 0
    %463 = vmatprep.subr.bf16.mxu0 0
    %464 = vmatpush2.bf16.msra.mxu0 0
    %465 = vmatprep.subr.bf16.mxu0 0
    %466 = vmatpush2.bf16.msra.mxu0 0
    %467 = vmatprep.mubr.bf16.mxu0 0
    %468 = vmatmul.mubr.bf16.gmra.mxu0 %v424
    %v469 = vpop.f32.mrf.mxu0
    %v470 = vadd.f32 %v409, %v469
    %v471 = vpop.f32.mrf.mxu0
    %v472 = vpop.f32.mrf.mxu0
    %v473 = vadd.f32 %v409, %v472
    %v474 = vpop.f32.mrf.mxu0
    %475 = vmatprep.mubr.bf16.mxu0 0
    %476 = vmatmul.mubr.bf16.gmra.mxu0 %v427
    %v477 = vpop.f32.mrf.mxu0
    %v478 = vadd.f32 %v409, %v477
    %v479 = vpop.f32.mrf.mxu0
    %v480 = vpop.f32.mrf.mxu0
    %v481 = vadd.f32 %v409, %v480
    %v482 = vpop.f32.mrf.mxu0
    %483 = vmatprep.mubr.bf16.mxu0 0
    %484 = vmatmul.mubr.bf16.gmra.mxu0 %v430
    %v485 = vpop.f32.mrf.mxu0
    %v486 = vadd.f32 %v409, %v485
    %v487 = vpop.f32.mrf.mxu0
    %v488 = vpop.f32.mrf.mxu0
    %v489 = vadd.f32 %v409, %v488
    %v490 = vpop.f32.mrf.mxu0
    %491 = vmatprep.mubr.bf16.mxu0 0
    %492 = vmatmul.mubr.bf16.gmra.mxu0 %v433
    %v493 = vpop.f32.mrf.mxu0
    %v494 = vadd.f32 %v409, %v493
    %v495 = vpop.f32.mrf.mxu0
    %v496 = vpop.f32.mrf.mxu0
    %v497 = vadd.f32 %v409, %v496
    %v498 = vpop.f32.mrf.mxu0
    %499 = vdwg.mxu0
    %v500 = vmax.f32 %v470, 0.0
    %v501 = vmax.f32 %v473, 0.0
    %v502 = vmax.f32 %v478, 0.0
    %v503 = vmax.f32 %v481, 0.0
    %v504 = vmax.f32 %v486, 0.0
    %v505 = vmax.f32 %v489, 0.0
    %v506 = vmax.f32 %v494, 0.0
    %v507 = vmax.f32 %v497, 0.0
    %v508 = vld [vmem:[#allocation9] sm:$0xf]
    %v509 = vld [vmem:[#allocation9 + $0x4] sm:$0xf]
    %v510 = vld [vmem:[#allocation9 + $0x8] sm:$0xf]
    %v511 = vld [vmem:[#allocation9 + $0xc] sm:$0xf]
    %v512 = vpack.c.bf16 %v501, %v500
    %v513 = vpack.c.bf16 %v503, %v502
    %v514 = vpack.c.bf16 %v505, %v504
    %v515 = vpack.c.bf16 %v507, %v506
    %v516 = vld [vmem:[%s8] sm:$0xff]
    %v517 = vld [vmem:[%s8 + $0x8] sm:$0xff]
    %v518 = vld [vmem:[%s8 + $0x10] sm:$0xff]
    %v519 = vld [vmem:[%s8 + $0x18] sm:$0xff]
    %521 = vset.pattern.permute.xlu0 0
    %522 = vperm.xlu0 %521, %v516
    %v523 = vpop.permute.xlu0 %522
    %526 = vset.pattern.permute.xlu0 0
    %527 = vperm.xlu0 %526, %v517
    %v528 = vpop.permute.xlu0 %527
    %531 = vset.pattern.permute.xlu0 0
    %532 = vperm.xlu0 %531, %v518
    %v533 = vpop.permute.xlu0 %532
    %536 = vset.pattern.permute.xlu0 0
    %537 = vperm.xlu0 %536, %v519
    %v538 = vpop.permute.xlu0 %537
    %v544 = vunpack.c.l.b16 %v508
    %v545 = vunpack.c.l.b16 %v509
    %v546 = vunpack.c.l.b16 %v510
    %v547 = vunpack.c.l.b16 %v511
    %v548 = vpack.c.b16 %v545, %v544
    %v549 = vpack.c.b16 %v547, %v546
    %v551 = vsel %vm283, %v548, 0
    %v554 = vsel %vm283, %v549, 0
    %556 = vmatprep.subr.bf16.mxu0 0
    %557 = vmatpush1.bf16.msra.mxu0 0
    %558 = vmatprep.subr.bf16.mxu0 0
    %559 = vmatpush1.bf16.msra.mxu0 0
    %560 = vmatprep.subr.bf16.mxu0 0
    %561 = vmatpush1.bf16.msra.mxu0 0
    %562 = vmatprep.subr.bf16.mxu0 0
    %563 = vmatpush1.bf16.msra.mxu0 0
    %564 = vmatprep.subr.bf16.mxu0 0
    %565 = vmatpush1.bf16.msra.mxu0 0
    %566 = vmatprep.subr.bf16.mxu0 0
    %567 = vmatpush1.bf16.msra.mxu0 0
    %568 = vmatprep.subr.bf16.mxu0 0
    %569 = vmatpush1.bf16.msra.mxu0 %v513
    %570 = vmatprep.subr.bf16.mxu0 0
    %571 = vmatpush1.bf16.msra.mxu0 %v512
    %572 = vmatprep.subr.bf16.mxu0 0
    %573 = vmatpush2.bf16.msra.mxu0 0
    %574 = vmatprep.subr.bf16.mxu0 0
    %575 = vmatpush2.bf16.msra.mxu0 0
    %576 = vmatprep.subr.bf16.mxu0 0
    %577 = vmatpush2.bf16.msra.mxu0 0
    %578 = vmatprep.subr.bf16.mxu0 0
    %579 = vmatpush2.bf16.msra.mxu0 0
    %580 = vmatprep.subr.bf16.mxu0 0
    %581 = vmatpush2.bf16.msra.mxu0 0
    %582 = vmatprep.subr.bf16.mxu0 0
    %583 = vmatpush2.bf16.msra.mxu0 0
    %584 = vmatprep.subr.bf16.mxu0 0
    %585 = vmatpush2.bf16.msra.mxu0 0
    %586 = vmatprep.subr.bf16.mxu0 0
    %587 = vmatpush2.bf16.msra.mxu0 0
    %588 = vmatprep.mubr.bf16.mxu0 0
    %589 = vmatmul.mubr.bf16.gmra.mxu0 %v551
    %v590 = vpop.f32.mrf.mxu0
    %v591 = vadd.f32 %v523, %v590
    %v592 = vpop.f32.mrf.mxu0
    %v593 = vpop.f32.mrf.mxu0
    %v594 = vadd.f32 %v528, %v593
    %v595 = vpop.f32.mrf.mxu0
    %596 = vmatprep.mubr.bf16.mxu0 0
    %597 = vmatmul.mubr.bf16.gmra.mxu0 %v554
    %v598 = vpop.f32.mrf.mxu0
    %v599 = vadd.f32 %v533, %v598
    %v600 = vpop.f32.mrf.mxu0
    %v601 = vpop.f32.mrf.mxu0
    %v602 = vadd.f32 %v538, %v601
    %v603 = vpop.f32.mrf.mxu0
    %604 = vdwg.mxu0
    %605 = vmatprep.subr.bf16.mxu0 0
    %606 = vmatpush1.bf16.msra.mxu0 0
    %607 = vmatprep.subr.bf16.mxu0 0
    %608 = vmatpush1.bf16.msra.mxu0 0
    %609 = vmatprep.subr.bf16.mxu0 0
    %610 = vmatpush1.bf16.msra.mxu0 0
    %611 = vmatprep.subr.bf16.mxu0 0
    %612 = vmatpush1.bf16.msra.mxu0 0
    %613 = vmatprep.subr.bf16.mxu0 0
    %614 = vmatpush1.bf16.msra.mxu0 0
    %615 = vmatprep.subr.bf16.mxu0 0
    %616 = vmatpush1.bf16.msra.mxu0 0
    %617 = vmatprep.subr.bf16.mxu0 0
    %618 = vmatpush1.bf16.msra.mxu0 %v515
    %619 = vmatprep.subr.bf16.mxu0 0
    %620 = vmatpush1.bf16.msra.mxu0 %v514
    %621 = vmatprep.subr.bf16.mxu0 0
    %622 = vmatpush2.bf16.msra.mxu0 0
    %623 = vmatprep.subr.bf16.mxu0 0
    %624 = vmatpush2.bf16.msra.mxu0 0
    %625 = vmatprep.subr.bf16.mxu0 0
    %626 = vmatpush2.bf16.msra.mxu0 0
    %627 = vmatprep.subr.bf16.mxu0 0
    %628 = vmatpush2.bf16.msra.mxu0 0
    %629 = vmatprep.subr.bf16.mxu0 0
    %630 = vmatpush2.bf16.msra.mxu0 0
    %631 = vmatprep.subr.bf16.mxu0 0
    %632 = vmatpush2.bf16.msra.mxu0 0
    %633 = vmatprep.subr.bf16.mxu0 0
    %634 = vmatpush2.bf16.msra.mxu0 0
    %635 = vmatprep.subr.bf16.mxu0 0
    %636 = vmatpush2.bf16.msra.mxu0 0
    %637 = vmatprep.mubr.bf16.mxu0 0
    %638 = vmatmul.mubr.bf16.gmra.mxu0 %v551
    %v639 = vpop.f32.mrf.mxu0
    %v640 = vadd.f32 %v523, %v639
    %v641 = vpop.f32.mrf.mxu0
    %v642 = vpop.f32.mrf.mxu0
    %v643 = vadd.f32 %v528, %v642
    %v644 = vpop.f32.mrf.mxu0
    %645 = vmatprep.mubr.bf16.mxu0 0
    %646 = vmatmul.mubr.bf16.gmra.mxu0 %v554
    %v647 = vpop.f32.mrf.mxu0
    %v648 = vadd.f32 %v533, %v647
    %v649 = vpop.f32.mrf.mxu0
    %v650 = vpop.f32.mrf.mxu0
    %v651 = vadd.f32 %v538, %v650
    %v652 = vpop.f32.mrf.mxu0
    %653 = vdwg.mxu0
    %v654 = vmax.f32 %v591, 0.0
    %v655 = vmax.f32 %v594, 0.0
    %v656 = vmax.f32 %v599, 0.0
    %v657 = vmax.f32 %v602, 0.0
    %v658 = vmax.f32 %v640, 0.0
    %v659 = vmax.f32 %v643, 0.0
    %v660 = vmax.f32 %v648, 0.0
    %v661 = vmax.f32 %v651, 0.0
    %v662 = vcombine.high %v654, 0.0
    %v664 = vunpack.c.l.s4 1983009808
    %v665 = vunpack.c.0.s8 %v664
    %v666 = vlaneseq
    %v667 = vshrl.u32 %v666, 7
    %v668 = vsub.s32 %v665, %v667
    %v669 = vrot.slane %v654, %v668
    %v671 = vunpack.c.l.s4 1983009808
    %v672 = vunpack.c.0.s8 %v671
    %v673 = vlaneseq
    %v674 = vshrl.u32 %v673, 7
    %v675 = vsub.s32 %v672, %v674
    %v676 = vrot.slane %v662, %v675
    %v677 = vcombine.high %v658, 0.0
    %v679 = vunpack.c.l.s4 1983009808
    %v680 = vunpack.c.0.s8 %v679
    %v681 = vlaneseq
    %v682 = vshrl.u32 %v681, 7
    %v683 = vsub.s32 %v680, %v682
    %v684 = vrot.slane %v658, %v683
    %v686 = vunpack.c.l.s4 1983009808
    %v687 = vunpack.c.0.s8 %v686
    %v688 = vlaneseq
    %v689 = vshrl.u32 %v688, 7
    %v690 = vsub.s32 %v687, %v689
    %v691 = vrot.slane %v677, %v690
    %v692 = vcombine.low %v669, %v684
    %v693 = vcombine.high %v669, %v684
    %v695 = vunpack.c.l.s4 1934713408
    %v696 = vunpack.c.0.s8 %v695
    %v697 = vlaneseq
    %v698 = vshrl.u32 %v697, 7
    %v699 = vsub.s32 %v696, %v698
    %v700 = vrot.slane %v692, %v699
    %v702 = vunpack.c.l.s4 1934713408
    %v703 = vunpack.c.0.s8 %v702
    %v704 = vlaneseq
    %v705 = vshrl.u32 %v704, 7
    %v706 = vsub.s32 %v703, %v705
    %v707 = vrot.slane %v693, %v706
    %v708 = vcombine.low %v676, %v691
    %v709 = vcombine.high %v676, %v691
    %v711 = vunpack.c.l.s4 1934713408
    %v712 = vunpack.c.0.s8 %v711
    %v713 = vlaneseq
    %v714 = vshrl.u32 %v713, 7
    %v715 = vsub.s32 %v712, %v714
    %v716 = vrot.slane %v708, %v715
    %v718 = vunpack.c.l.s4 1934713408
    %v719 = vunpack.c.0.s8 %v718
    %v720 = vlaneseq
    %v721 = vshrl.u32 %v720, 7
    %v722 = vsub.s32 %v719, %v721
    %v723 = vrot.slane %v709, %v722
    %v724 = vcombine.high %v700, 0.0
    %v725 = vcombine.high %v707, 0.0
    %v726 = vcombine.high %v716, 0.0
    %v727 = vcombine.high %v723, 0.0
    %v728 = vcombine.high %v655, 0.0
    %v730 = vunpack.c.l.s4 1983009808
    %v731 = vunpack.c.0.s8 %v730
    %v732 = vlaneseq
    %v733 = vshrl.u32 %v732, 7
    %v734 = vsub.s32 %v731, %v733
    %v735 = vrot.slane %v655, %v734
    %v737 = vunpack.c.l.s4 1983009808
    %v738 = vunpack.c.0.s8 %v737
    %v739 = vlaneseq
    %v740 = vshrl.u32 %v739, 7
    %v741 = vsub.s32 %v738, %v740
    %v742 = vrot.slane %v728, %v741
    %v743 = vcombine.high %v659, 0.0
    %v745 = vunpack.c.l.s4 1983009808
    %v746 = vunpack.c.0.s8 %v745
    %v747 = vlaneseq
    %v748 = vshrl.u32 %v747, 7
    %v749 = vsub.s32 %v746, %v748
    %v750 = vrot.slane %v659, %v749
    %v752 = vunpack.c.l.s4 1983009808
    %v753 = vunpack.c.0.s8 %v752
    %v754 = vlaneseq
    %v755 = vshrl.u32 %v754, 7
    %v756 = vsub.s32 %v753, %v755
    %v757 = vrot.slane %v743, %v756
    %v758 = vcombine.low %v735, %v750
    %v759 = vcombine.high %v735, %v750
    %v761 = vunpack.c.l.s4 1934713408
    %v762 = vunpack.c.0.s8 %v761
    %v763 = vlaneseq
    %v764 = vshrl.u32 %v763, 7
    %v765 = vsub.s32 %v762, %v764
    %v766 = vrot.slane %v758, %v765
    %v768 = vunpack.c.l.s4 1934713408
    %v769 = vunpack.c.0.s8 %v768
    %v770 = vlaneseq
    %v771 = vshrl.u32 %v770, 7
    %v772 = vsub.s32 %v769, %v771
    %v773 = vrot.slane %v759, %v772
    %v774 = vcombine.low %v742, %v757
    %v775 = vcombine.high %v742, %v757
    %v777 = vunpack.c.l.s4 1934713408
    %v778 = vunpack.c.0.s8 %v777
    %v779 = vlaneseq
    %v780 = vshrl.u32 %v779, 7
    %v781 = vsub.s32 %v778, %v780
    %v782 = vrot.slane %v774, %v781
    %v784 = vunpack.c.l.s4 1934713408
    %v785 = vunpack.c.0.s8 %v784
    %v786 = vlaneseq
    %v787 = vshrl.u32 %v786, 7
    %v788 = vsub.s32 %v785, %v787
    %v789 = vrot.slane %v775, %v788
    %v790 = vcombine.high %v766, 0.0
    %v791 = vcombine.high %v773, 0.0
    %v792 = vcombine.high %v782, 0.0
    %v793 = vcombine.high %v789, 0.0
    %v794 = vcombine.high %v656, 0.0
    %v796 = vunpack.c.l.s4 1983009808
    %v797 = vunpack.c.0.s8 %v796
    %v798 = vlaneseq
    %v799 = vshrl.u32 %v798, 7
    %v800 = vsub.s32 %v797, %v799
    %v801 = vrot.slane %v656, %v800
    %v803 = vunpack.c.l.s4 1983009808
    %v804 = vunpack.c.0.s8 %v803
    %v805 = vlaneseq
    %v806 = vshrl.u32 %v805, 7
    %v807 = vsub.s32 %v804, %v806
    %v808 = vrot.slane %v794, %v807
    %v809 = vcombine.high %v660, 0.0
    %v811 = vunpack.c.l.s4 1983009808
    %v812 = vunpack.c.0.s8 %v811
    %v813 = vlaneseq
    %v814 = vshrl.u32 %v813, 7
    %v815 = vsub.s32 %v812, %v814
    %v816 = vrot.slane %v660, %v815
    %v818 = vunpack.c.l.s4 1983009808
    %v819 = vunpack.c.0.s8 %v818
    %v820 = vlaneseq
    %v821 = vshrl.u32 %v820, 7
    %v822 = vsub.s32 %v819, %v821
    %v823 = vrot.slane %v809, %v822
    %v824 = vcombine.low %v801, %v816
    %v825 = vcombine.high %v801, %v816
    %v827 = vunpack.c.l.s4 1934713408
    %v828 = vunpack.c.0.s8 %v827
    %v829 = vlaneseq
    %v830 = vshrl.u32 %v829, 7
    %v831 = vsub.s32 %v828, %v830
    %v832 = vrot.slane %v824, %v831
    %v834 = vunpack.c.l.s4 1934713408
    %v835 = vunpack.c.0.s8 %v834
    %v836 = vlaneseq
    %v837 = vshrl.u32 %v836, 7
    %v838 = vsub.s32 %v835, %v837
    %v839 = vrot.slane %v825, %v838
    %v840 = vcombine.low %v808, %v823
    %v841 = vcombine.high %v808, %v823
    %v843 = vunpack.c.l.s4 1934713408
    %v844 = vunpack.c.0.s8 %v843
    %v845 = vlaneseq
    %v846 = vshrl.u32 %v845, 7
    %v847 = vsub.s32 %v844, %v846
    %v848 = vrot.slane %v840, %v847
    %v850 = vunpack.c.l.s4 1934713408
    %v851 = vunpack.c.0.s8 %v850
    %v852 = vlaneseq
    %v853 = vshrl.u32 %v852, 7
    %v854 = vsub.s32 %v851, %v853
    %v855 = vrot.slane %v841, %v854
    %v856 = vcombine.high %v832, 0.0
    %v857 = vcombine.high %v839, 0.0
    %v858 = vcombine.high %v848, 0.0
    %v859 = vcombine.high %v855, 0.0
    %v860 = vcombine.high %v657, 0.0
    %v862 = vunpack.c.l.s4 1983009808
    %v863 = vunpack.c.0.s8 %v862
    %v864 = vlaneseq
    %v865 = vshrl.u32 %v864, 7
    %v866 = vsub.s32 %v863, %v865
    %v867 = vrot.slane %v657, %v866
    %v869 = vunpack.c.l.s4 1983009808
    %v870 = vunpack.c.0.s8 %v869
    %v871 = vlaneseq
    %v872 = vshrl.u32 %v871, 7
    %v873 = vsub.s32 %v870, %v872
    %v874 = vrot.slane %v860, %v873
    %v875 = vcombine.high %v661, 0.0
    %v877 = vunpack.c.l.s4 1983009808
    %v878 = vunpack.c.0.s8 %v877
    %v879 = vlaneseq
    %v880 = vshrl.u32 %v879, 7
    %v881 = vsub.s32 %v878, %v880
    %v882 = vrot.slane %v661, %v881
    %v884 = vunpack.c.l.s4 1983009808
    %v885 = vunpack.c.0.s8 %v884
    %v886 = vlaneseq
    %v887 = vshrl.u32 %v886, 7
    %v888 = vsub.s32 %v885, %v887
    %v889 = vrot.slane %v875, %v888
    %v890 = vcombine.low %v867, %v882
    %v891 = vcombine.high %v867, %v882
    %v893 = vunpack.c.l.s4 1934713408
    %v894 = vunpack.c.0.s8 %v893
    %v895 = vlaneseq
    %v896 = vshrl.u32 %v895, 7
    %v897 = vsub.s32 %v894, %v896
    %v898 = vrot.slane %v890, %v897
    %v900 = vunpack.c.l.s4 1934713408
    %v901 = vunpack.c.0.s8 %v900
    %v902 = vlaneseq
    %v903 = vshrl.u32 %v902, 7
    %v904 = vsub.s32 %v901, %v903
    %v905 = vrot.slane %v891, %v904
    %v906 = vcombine.low %v874, %v889
    %v907 = vcombine.high %v874, %v889
    %v909 = vunpack.c.l.s4 1934713408
    %v910 = vunpack.c.0.s8 %v909
    %v911 = vlaneseq
    %v912 = vshrl.u32 %v911, 7
    %v913 = vsub.s32 %v910, %v912
    %v914 = vrot.slane %v906, %v913
    %v916 = vunpack.c.l.s4 1934713408
    %v917 = vunpack.c.0.s8 %v916
    %v918 = vlaneseq
    %v919 = vshrl.u32 %v918, 7
    %v920 = vsub.s32 %v917, %v919
    %v921 = vrot.slane %v907, %v920
    %v922 = vcombine.high %v898, 0.0
    %v923 = vcombine.high %v905, 0.0
    %v924 = vcombine.high %v914, 0.0
    %v925 = vcombine.high %v921, 0.0
    %927 = vrot.lane.b32.xlu0 %v724, 32
    %v928 = vpop.permute.xlu0 %927
    %931 = vrot.lane.b32.xlu0 %v707, 64
    %v932 = vpop.permute.xlu0 %931
    %935 = vrot.lane.b32.xlu0 %v725, 96
    %v936 = vpop.permute.xlu0 %935
    %939 = vrot.lane.b32.xlu0 %v726, 32
    %v940 = vpop.permute.xlu0 %939
    %943 = vrot.lane.b32.xlu0 %v723, 64
    %v944 = vpop.permute.xlu0 %943
    %947 = vrot.lane.b32.xlu0 %v727, 96
    %v948 = vpop.permute.xlu0 %947
    %951 = vrot.lane.b32.xlu0 %v790, 32
    %v952 = vpop.permute.xlu0 %951
    %955 = vrot.lane.b32.xlu0 %v773, 64
    %v956 = vpop.permute.xlu0 %955
    %959 = vrot.lane.b32.xlu0 %v791, 96
    %v960 = vpop.permute.xlu0 %959
    %963 = vrot.lane.b32.xlu0 %v792, 32
    %v964 = vpop.permute.xlu0 %963
    %967 = vrot.lane.b32.xlu0 %v789, 64
    %v968 = vpop.permute.xlu0 %967
    %971 = vrot.lane.b32.xlu0 %v793, 96
    %v972 = vpop.permute.xlu0 %971
    %975 = vrot.lane.b32.xlu0 %v856, 32
    %v976 = vpop.permute.xlu0 %975
    %979 = vrot.lane.b32.xlu0 %v839, 64
    %v980 = vpop.permute.xlu0 %979
    %983 = vrot.lane.b32.xlu0 %v857, 96
    %v984 = vpop.permute.xlu0 %983
    %987 = vrot.lane.b32.xlu0 %v858, 32
    %v988 = vpop.permute.xlu0 %987
    %991 = vrot.lane.b32.xlu0 %v855, 64
    %v992 = vpop.permute.xlu0 %991
    %995 = vrot.lane.b32.xlu0 %v859, 96
    %v996 = vpop.permute.xlu0 %995
    %999 = vrot.lane.b32.xlu0 %v922, 32
    %v1000 = vpop.permute.xlu0 %999
    %1003 = vrot.lane.b32.xlu0 %v905, 64
    %v1004 = vpop.permute.xlu0 %1003
    %1007 = vrot.lane.b32.xlu0 %v923, 96
    %v1008 = vpop.permute.xlu0 %1007
    %1011 = vrot.lane.b32.xlu0 %v924, 32
    %v1012 = vpop.permute.xlu0 %1011
    %1015 = vrot.lane.b32.xlu0 %v921, 64
    %v1016 = vpop.permute.xlu0 %1015
    %1019 = vrot.lane.b32.xlu0 %v925, 96
    %v1020 = vpop.permute.xlu0 %1019
    %v1022 = vsel %vm283, %v700, %v928
    %vm1023 = vcmask 523264
    %v1024 = vsel %vm1023, %v1022, %v932
    %vm1025 = vcmask 785408
    %v1026 = vsel %vm1025, %v1024, %v936
    %v1027 = vsel %vm283, %v716, %v940
    %v1028 = vsel %vm1023, %v1027, %v944
    %v1029 = vsel %vm1025, %v1028, %v948
    %v1030 = vsel %vm283, %v766, %v952
    %v1031 = vsel %vm1023, %v1030, %v956
    %v1032 = vsel %vm1025, %v1031, %v960
    %v1033 = vsel %vm283, %v782, %v964
    %v1034 = vsel %vm1023, %v1033, %v968
    %v1035 = vsel %vm1025, %v1034, %v972
    %v1036 = vsel %vm283, %v832, %v976
    %v1037 = vsel %vm1023, %v1036, %v980
    %v1038 = vsel %vm1025, %v1037, %v984
    %v1039 = vsel %vm283, %v848, %v988
    %v1040 = vsel %vm1023, %v1039, %v992
    %v1041 = vsel %vm1025, %v1040, %v996
    %v1042 = vsel %vm283, %v898, %v1000
    %v1043 = vsel %vm1023, %v1042, %v1004
    %v1044 = vsel %vm1025, %v1043, %v1008
    %v1045 = vsel %vm283, %v914, %v1012
    %v1046 = vsel %vm1023, %v1045, %v1016
    %v1047 = vsel %vm1025, %v1046, %v1020
    %v1048 = vpack.c.bf16 %v1026, %v1026
    %v1049 = vpack.c.bf16 %v1029, %v1029
    %v1050 = vpack.c.bf16 %v1032, %v1032
    %v1051 = vpack.c.bf16 %v1035, %v1035
    %v1052 = vpack.c.bf16 %v1038, %v1038
    %v1053 = vpack.c.bf16 %v1041, %v1041
    %v1054 = vpack.c.bf16 %v1044, %v1044
    %v1055 = vpack.c.bf16 %v1047, %v1047
    %s1056 = smul.u32 4, 64
    %s1057 = smul.u32 %s1056, 4
    %s1058 = sshll.u32 %s1057, 4
    %1059 = dma.done [#allocation3], %s1058
    %v1060 = vld [vmem:[#allocation2] sm:$0xff]
    %v1061 = vld [vmem:[#allocation2 + $0x8] sm:$0xff]
    %v1062 = vld [vmem:[#allocation2 + $0x10] sm:$0xff]
    %v1063 = vld [vmem:[#allocation2 + $0x18] sm:$0xff]
    %v1064 = vld [vmem:[#allocation2 + $0x20] sm:$0xff]
    %v1065 = vld [vmem:[#allocation2 + $0x28] sm:$0xff]
    %v1066 = vld [vmem:[#allocation2 + $0x30] sm:$0xff]
    %v1067 = vld [vmem:[#allocation2 + $0x38] sm:$0xff]
    %v1068 = vld [vmem:[#allocation2 + $0x40] sm:$0xff]
    %v1069 = vld [vmem:[#allocation2 + $0x48] sm:$0xff]
    %v1070 = vld [vmem:[#allocation2 + $0x50] sm:$0xff]
    %v1071 = vld [vmem:[#allocation2 + $0x58] sm:$0xff]
    %v1072 = vld [vmem:[#allocation2 + $0x60] sm:$0xff]
    %v1073 = vld [vmem:[#allocation2 + $0x68] sm:$0xff]
    %v1074 = vld [vmem:[#allocation2 + $0x70] sm:$0xff]
    %v1075 = vld [vmem:[#allocation2 + $0x78] sm:$0xff]
    %v1076 = vld [vmem:[#allocation2 + $0x80] sm:$0xff]
    %v1077 = vld [vmem:[#allocation2 + $0x88] sm:$0xff]
    %v1078 = vld [vmem:[#allocation2 + $0x90] sm:$0xff]
    %v1079 = vld [vmem:[#allocation2 + $0x98] sm:$0xff]
    %v1080 = vld [vmem:[#allocation2 + $0xa0] sm:$0xff]
    %v1081 = vld [vmem:[#allocation2 + $0xa8] sm:$0xff]
    %v1082 = vld [vmem:[#allocation2 + $0xb0] sm:$0xff]
    %v1083 = vld [vmem:[#allocation2 + $0xb8] sm:$0xff]
    %v1084 = vld [vmem:[#allocation2 + $0xc0] sm:$0xff]
    %v1085 = vld [vmem:[#allocation2 + $0xc8] sm:$0xff]
    %v1086 = vld [vmem:[#allocation2 + $0xd0] sm:$0xff]
    %v1087 = vld [vmem:[#allocation2 + $0xd8] sm:$0xff]
    %v1088 = vld [vmem:[#allocation2 + $0xe0] sm:$0xff]
    %v1089 = vld [vmem:[#allocation2 + $0xe8] sm:$0xff]
    %v1090 = vld [vmem:[#allocation2 + $0xf0] sm:$0xff]
    %v1091 = vld [vmem:[#allocation2 + $0xf8] sm:$0xff]
    %v1092 = vld [vmem:[#allocation2 + $0x100] sm:$0xff]
    %v1093 = vld [vmem:[#allocation2 + $0x108] sm:$0xff]
    %v1094 = vld [vmem:[#allocation2 + $0x110] sm:$0xff]
    %v1095 = vld [vmem:[#allocation2 + $0x118] sm:$0xff]
    %v1096 = vld [vmem:[#allocation2 + $0x120] sm:$0xff]
    %v1097 = vld [vmem:[#allocation2 + $0x128] sm:$0xff]
    %v1098 = vld [vmem:[#allocation2 + $0x130] sm:$0xff]
    %v1099 = vld [vmem:[#allocation2 + $0x138] sm:$0xff]
    %v1100 = vld [vmem:[#allocation2 + $0x140] sm:$0xff]
    %v1101 = vld [vmem:[#allocation2 + $0x148] sm:$0xff]
    %v1102 = vld [vmem:[#allocation2 + $0x150] sm:$0xff]
    %v1103 = vld [vmem:[#allocation2 + $0x158] sm:$0xff]
    %v1104 = vld [vmem:[#allocation2 + $0x160] sm:$0xff]
    %v1105 = vld [vmem:[#allocation2 + $0x168] sm:$0xff]
    %v1106 = vld [vmem:[#allocation2 + $0x170] sm:$0xff]
    %v1107 = vld [vmem:[#allocation2 + $0x178] sm:$0xff]
    %v1108 = vld [vmem:[#allocation2 + $0x180] sm:$0xff]
    %v1109 = vld [vmem:[#allocation2 + $0x188] sm:$0xff]
    %v1110 = vld [vmem:[#allocation2 + $0x190] sm:$0xff]
    %v1111 = vld [vmem:[#allocation2 + $0x198] sm:$0xff]
    %v1112 = vld [vmem:[#allocation2 + $0x1a0] sm:$0xff]
    %v1113 = vld [vmem:[#allocation2 + $0x1a8] sm:$0xff]
    %v1114 = vld [vmem:[#allocation2 + $0x1b0] sm:$0xff]
    %v1115 = vld [vmem:[#allocation2 + $0x1b8] sm:$0xff]
    %v1116 = vld [vmem:[#allocation2 + $0x1c0] sm:$0xff]
    %v1117 = vld [vmem:[#allocation2 + $0x1c8] sm:$0xff]
    %v1118 = vld [vmem:[#allocation2 + $0x1d0] sm:$0xff]
    %v1119 = vld [vmem:[#allocation2 + $0x1d8] sm:$0xff]
    %v1120 = vld [vmem:[#allocation2 + $0x1e0] sm:$0xff]
    %v1121 = vld [vmem:[#allocation2 + $0x1e8] sm:$0xff]
    %v1122 = vld [vmem:[#allocation2 + $0x1f0] sm:$0xff]
    %v1123 = vld [vmem:[#allocation2 + $0x1f8] sm:$0xff]
    %v1124 = vld [vmem:[#allocation2 + $0x200] sm:$0xff]
    %v1125 = vld [vmem:[#allocation2 + $0x208] sm:$0xff]
    %v1126 = vld [vmem:[#allocation2 + $0x210] sm:$0xff]
    %v1127 = vld [vmem:[#allocation2 + $0x218] sm:$0xff]
    %v1128 = vld [vmem:[#allocation2 + $0x220] sm:$0xff]
    %v1129 = vld [vmem:[#allocation2 + $0x228] sm:$0xff]
    %v1130 = vld [vmem:[#allocation2 + $0x230] sm:$0xff]
    %v1131 = vld [vmem:[#allocation2 + $0x238] sm:$0xff]
    %v1132 = vld [vmem:[#allocation2 + $0x240] sm:$0xff]
    %v1133 = vld [vmem:[#allocation2 + $0x248] sm:$0xff]
    %v1134 = vld [vmem:[#allocation2 + $0x250] sm:$0xff]
    %v1135 = vld [vmem:[#allocation2 + $0x258] sm:$0xff]
    %v1136 = vld [vmem:[#allocation2 + $0x260] sm:$0xff]
    %v1137 = vld [vmem:[#allocation2 + $0x268] sm:$0xff]
    %v1138 = vld [vmem:[#allocation2 + $0x270] sm:$0xff]
    %v1139 = vld [vmem:[#allocation2 + $0x278] sm:$0xff]
    %v1140 = vld [vmem:[#allocation2 + $0x280] sm:$0xff]
    %v1141 = vld [vmem:[#allocation2 + $0x288] sm:$0xff]
    %v1142 = vld [vmem:[#allocation2 + $0x290] sm:$0xff]
    %v1143 = vld [vmem:[#allocation2 + $0x298] sm:$0xff]
    %v1144 = vld [vmem:[#allocation2 + $0x2a0] sm:$0xff]
    %v1145 = vld [vmem:[#allocation2 + $0x2a8] sm:$0xff]
    %v1146 = vld [vmem:[#allocation2 + $0x2b0] sm:$0xff]
    %v1147 = vld [vmem:[#allocation2 + $0x2b8] sm:$0xff]
    %v1148 = vld [vmem:[#allocation2 + $0x2c0] sm:$0xff]
    %v1149 = vld [vmem:[#allocation2 + $0x2c8] sm:$0xff]
    %v1150 = vld [vmem:[#allocation2 + $0x2d0] sm:$0xff]
    %v1151 = vld [vmem:[#allocation2 + $0x2d8] sm:$0xff]
    %v1152 = vld [vmem:[#allocation2 + $0x2e0] sm:$0xff]
    %v1153 = vld [vmem:[#allocation2 + $0x2e8] sm:$0xff]
    %v1154 = vld [vmem:[#allocation2 + $0x2f0] sm:$0xff]
    %v1155 = vld [vmem:[#allocation2 + $0x2f8] sm:$0xff]
    %v1156 = vld [vmem:[#allocation2 + $0x300] sm:$0xff]
    %v1157 = vld [vmem:[#allocation2 + $0x308] sm:$0xff]
    %v1158 = vld [vmem:[#allocation2 + $0x310] sm:$0xff]
    %v1159 = vld [vmem:[#allocation2 + $0x318] sm:$0xff]
    %v1160 = vld [vmem:[#allocation2 + $0x320] sm:$0xff]
    %v1161 = vld [vmem:[#allocation2 + $0x328] sm:$0xff]
    %v1162 = vld [vmem:[#allocation2 + $0x330] sm:$0xff]
    %v1163 = vld [vmem:[#allocation2 + $0x338] sm:$0xff]
    %v1164 = vld [vmem:[#allocation2 + $0x340] sm:$0xff]
    %v1165 = vld [vmem:[#allocation2 + $0x348] sm:$0xff]
    %v1166 = vld [vmem:[#allocation2 + $0x350] sm:$0xff]
    %v1167 = vld [vmem:[#allocation2 + $0x358] sm:$0xff]
    %v1168 = vld [vmem:[#allocation2 + $0x360] sm:$0xff]
    %v1169 = vld [vmem:[#allocation2 + $0x368] sm:$0xff]
    %v1170 = vld [vmem:[#allocation2 + $0x370] sm:$0xff]
    %v1171 = vld [vmem:[#allocation2 + $0x378] sm:$0xff]
    %v1172 = vld [vmem:[#allocation2 + $0x380] sm:$0xff]
    %v1173 = vld [vmem:[#allocation2 + $0x388] sm:$0xff]
    %v1174 = vld [vmem:[#allocation2 + $0x390] sm:$0xff]
    %v1175 = vld [vmem:[#allocation2 + $0x398] sm:$0xff]
    %v1176 = vld [vmem:[#allocation2 + $0x3a0] sm:$0xff]
    %v1177 = vld [vmem:[#allocation2 + $0x3a8] sm:$0xff]
    %v1178 = vld [vmem:[#allocation2 + $0x3b0] sm:$0xff]
    %v1179 = vld [vmem:[#allocation2 + $0x3b8] sm:$0xff]
    %v1180 = vld [vmem:[#allocation2 + $0x3c0] sm:$0xff]
    %v1181 = vld [vmem:[#allocation2 + $0x3c8] sm:$0xff]
    %v1182 = vld [vmem:[#allocation2 + $0x3d0] sm:$0xff]
    %v1183 = vld [vmem:[#allocation2 + $0x3d8] sm:$0xff]
    %v1184 = vld [vmem:[#allocation2 + $0x3e0] sm:$0xff]
    %v1185 = vld [vmem:[#allocation2 + $0x3e8] sm:$0xff]
    %v1186 = vld [vmem:[#allocation2 + $0x3f0] sm:$0xff]
    %v1187 = vld [vmem:[#allocation2 + $0x3f8] sm:$0xff]
    %s1188 = sshll.u32 %s1057, 4
    %1189 = dma.done %s119, %s1188
    %v1190 = vld [vmem:[%s118] sm:$0xff]
    %v1191 = vld [vmem:[%s118 + $0x8] sm:$0xff]
    %v1192 = vld [vmem:[%s118 + $0x10] sm:$0xff]
    %v1193 = vld [vmem:[%s118 + $0x18] sm:$0xff]
    %v1194 = vld [vmem:[%s118 + $0x20] sm:$0xff]
    %v1195 = vld [vmem:[%s118 + $0x28] sm:$0xff]
    %v1196 = vld [vmem:[%s118 + $0x30] sm:$0xff]
    %v1197 = vld [vmem:[%s118 + $0x38] sm:$0xff]
    %v1198 = vld [vmem:[%s118 + $0x40] sm:$0xff]
    %v1199 = vld [vmem:[%s118 + $0x48] sm:$0xff]
    %v1200 = vld [vmem:[%s118 + $0x50] sm:$0xff]
    %v1201 = vld [vmem:[%s118 + $0x58] sm:$0xff]
    %v1202 = vld [vmem:[%s118 + $0x60] sm:$0xff]
    %v1203 = vld [vmem:[%s118 + $0x68] sm:$0xff]
    %v1204 = vld [vmem:[%s118 + $0x70] sm:$0xff]
    %v1205 = vld [vmem:[%s118 + $0x78] sm:$0xff]
    %v1206 = vld [vmem:[%s118 + $0x80] sm:$0xff]
    %v1207 = vld [vmem:[%s118 + $0x88] sm:$0xff]
    %v1208 = vld [vmem:[%s118 + $0x90] sm:$0xff]
    %v1209 = vld [vmem:[%s118 + $0x98] sm:$0xff]
    %v1210 = vld [vmem:[%s118 + $0xa0] sm:$0xff]
    %v1211 = vld [vmem:[%s118 + $0xa8] sm:$0xff]
    %v1212 = vld [vmem:[%s118 + $0xb0] sm:$0xff]
    %v1213 = vld [vmem:[%s118 + $0xb8] sm:$0xff]
    %v1214 = vld [vmem:[%s118 + $0xc0] sm:$0xff]
    %v1215 = vld [vmem:[%s118 + $0xc8] sm:$0xff]
    %v1216 = vld [vmem:[%s118 + $0xd0] sm:$0xff]
    %v1217 = vld [vmem:[%s118 + $0xd8] sm:$0xff]
    %v1218 = vld [vmem:[%s118 + $0xe0] sm:$0xff]
    %v1219 = vld [vmem:[%s118 + $0xe8] sm:$0xff]
    %v1220 = vld [vmem:[%s118 + $0xf0] sm:$0xff]
    %v1221 = vld [vmem:[%s118 + $0xf8] sm:$0xff]
    %v1222 = vld [vmem:[%s118 + $0x100] sm:$0xff]
    %v1223 = vld [vmem:[%s118 + $0x108] sm:$0xff]
    %v1224 = vld [vmem:[%s118 + $0x110] sm:$0xff]
    %v1225 = vld [vmem:[%s118 + $0x118] sm:$0xff]
    %v1226 = vld [vmem:[%s118 + $0x120] sm:$0xff]
    %v1227 = vld [vmem:[%s118 + $0x128] sm:$0xff]
    %v1228 = vld [vmem:[%s118 + $0x130] sm:$0xff]
    %v1229 = vld [vmem:[%s118 + $0x138] sm:$0xff]
    %v1230 = vld [vmem:[%s118 + $0x140] sm:$0xff]
    %v1231 = vld [vmem:[%s118 + $0x148] sm:$0xff]
    %v1232 = vld [vmem:[%s118 + $0x150] sm:$0xff]
    %v1233 = vld [vmem:[%s118 + $0x158] sm:$0xff]
    %v1234 = vld [vmem:[%s118 + $0x160] sm:$0xff]
    %v1235 = vld [vmem:[%s118 + $0x168] sm:$0xff]
    %v1236 = vld [vmem:[%s118 + $0x170] sm:$0xff]
    %v1237 = vld [vmem:[%s118 + $0x178] sm:$0xff]
    %v1238 = vld [vmem:[%s118 + $0x180] sm:$0xff]
    %v1239 = vld [vmem:[%s118 + $0x188] sm:$0xff]
    %v1240 = vld [vmem:[%s118 + $0x190] sm:$0xff]
    %v1241 = vld [vmem:[%s118 + $0x198] sm:$0xff]
    %v1242 = vld [vmem:[%s118 + $0x1a0] sm:$0xff]
    %v1243 = vld [vmem:[%s118 + $0x1a8] sm:$0xff]
    %v1244 = vld [vmem:[%s118 + $0x1b0] sm:$0xff]
    %v1245 = vld [vmem:[%s118 + $0x1b8] sm:$0xff]
    %v1246 = vld [vmem:[%s118 + $0x1c0] sm:$0xff]
    %v1247 = vld [vmem:[%s118 + $0x1c8] sm:$0xff]
    %v1248 = vld [vmem:[%s118 + $0x1d0] sm:$0xff]
    %v1249 = vld [vmem:[%s118 + $0x1d8] sm:$0xff]
    %v1250 = vld [vmem:[%s118 + $0x1e0] sm:$0xff]
    %v1251 = vld [vmem:[%s118 + $0x1e8] sm:$0xff]
    %v1252 = vld [vmem:[%s118 + $0x1f0] sm:$0xff]
    %v1253 = vld [vmem:[%s118 + $0x1f8] sm:$0xff]
    %v1254 = vld [vmem:[%s118 + $0x200] sm:$0xff]
    %v1255 = vld [vmem:[%s118 + $0x208] sm:$0xff]
    %v1256 = vld [vmem:[%s118 + $0x210] sm:$0xff]
    %v1257 = vld [vmem:[%s118 + $0x218] sm:$0xff]
    %v1258 = vld [vmem:[%s118 + $0x220] sm:$0xff]
    %v1259 = vld [vmem:[%s118 + $0x228] sm:$0xff]
    %v1260 = vld [vmem:[%s118 + $0x230] sm:$0xff]
    %v1261 = vld [vmem:[%s118 + $0x238] sm:$0xff]
    %v1262 = vld [vmem:[%s118 + $0x240] sm:$0xff]
    %v1263 = vld [vmem:[%s118 + $0x248] sm:$0xff]
    %v1264 = vld [vmem:[%s118 + $0x250] sm:$0xff]
    %v1265 = vld [vmem:[%s118 + $0x258] sm:$0xff]
    %v1266 = vld [vmem:[%s118 + $0x260] sm:$0xff]
    %v1267 = vld [vmem:[%s118 + $0x268] sm:$0xff]
    %v1268 = vld [vmem:[%s118 + $0x270] sm:$0xff]
    %v1269 = vld [vmem:[%s118 + $0x278] sm:$0xff]
    %v1270 = vld [vmem:[%s118 + $0x280] sm:$0xff]
    %v1271 = vld [vmem:[%s118 + $0x288] sm:$0xff]
    %v1272 = vld [vmem:[%s118 + $0x290] sm:$0xff]
    %v1273 = vld [vmem:[%s118 + $0x298] sm:$0xff]
    %v1274 = vld [vmem:[%s118 + $0x2a0] sm:$0xff]
    %v1275 = vld [vmem:[%s118 + $0x2a8] sm:$0xff]
    %v1276 = vld [vmem:[%s118 + $0x2b0] sm:$0xff]
    %v1277 = vld [vmem:[%s118 + $0x2b8] sm:$0xff]
    %v1278 = vld [vmem:[%s118 + $0x2c0] sm:$0xff]
    %v1279 = vld [vmem:[%s118 + $0x2c8] sm:$0xff]
    %v1280 = vld [vmem:[%s118 + $0x2d0] sm:$0xff]
    %v1281 = vld [vmem:[%s118 + $0x2d8] sm:$0xff]
    %v1282 = vld [vmem:[%s118 + $0x2e0] sm:$0xff]
    %v1283 = vld [vmem:[%s118 + $0x2e8] sm:$0xff]
    %v1284 = vld [vmem:[%s118 + $0x2f0] sm:$0xff]
    %v1285 = vld [vmem:[%s118 + $0x2f8] sm:$0xff]
    %v1286 = vld [vmem:[%s118 + $0x300] sm:$0xff]
    %v1287 = vld [vmem:[%s118 + $0x308] sm:$0xff]
    %v1288 = vld [vmem:[%s118 + $0x310] sm:$0xff]
    %v1289 = vld [vmem:[%s118 + $0x318] sm:$0xff]
    %v1290 = vld [vmem:[%s118 + $0x320] sm:$0xff]
    %v1291 = vld [vmem:[%s118 + $0x328] sm:$0xff]
    %v1292 = vld [vmem:[%s118 + $0x330] sm:$0xff]
    %v1293 = vld [vmem:[%s118 + $0x338] sm:$0xff]
    %v1294 = vld [vmem:[%s118 + $0x340] sm:$0xff]
    %v1295 = vld [vmem:[%s118 + $0x348] sm:$0xff]
    %v1296 = vld [vmem:[%s118 + $0x350] sm:$0xff]
    %v1297 = vld [vmem:[%s118 + $0x358] sm:$0xff]
    %v1298 = vld [vmem:[%s118 + $0x360] sm:$0xff]
    %v1299 = vld [vmem:[%s118 + $0x368] sm:$0xff]
    %v1300 = vld [vmem:[%s118 + $0x370] sm:$0xff]
    %v1301 = vld [vmem:[%s118 + $0x378] sm:$0xff]
    %v1302 = vld [vmem:[%s118 + $0x380] sm:$0xff]
    %v1303 = vld [vmem:[%s118 + $0x388] sm:$0xff]
    %v1304 = vld [vmem:[%s118 + $0x390] sm:$0xff]
    %v1305 = vld [vmem:[%s118 + $0x398] sm:$0xff]
    %v1306 = vld [vmem:[%s118 + $0x3a0] sm:$0xff]
    %v1307 = vld [vmem:[%s118 + $0x3a8] sm:$0xff]
    %v1308 = vld [vmem:[%s118 + $0x3b0] sm:$0xff]
    %v1309 = vld [vmem:[%s118 + $0x3b8] sm:$0xff]
    %v1310 = vld [vmem:[%s118 + $0x3c0] sm:$0xff]
    %v1311 = vld [vmem:[%s118 + $0x3c8] sm:$0xff]
    %v1312 = vld [vmem:[%s118 + $0x3d0] sm:$0xff]
    %v1313 = vld [vmem:[%s118 + $0x3d8] sm:$0xff]
    %v1314 = vld [vmem:[%s118 + $0x3e0] sm:$0xff]
    %v1315 = vld [vmem:[%s118 + $0x3e8] sm:$0xff]
    %v1316 = vld [vmem:[%s118 + $0x3f0] sm:$0xff]
    %v1317 = vld [vmem:[%s118 + $0x3f8] sm:$0xff]
    %v1446 = vunpack.c.l.b16 %v1190
    %v1447 = vunpack.c.h.b16 %v1190
    %v1448 = vunpack.c.l.b16 %v1191
    %v1449 = vunpack.c.h.b16 %v1191
    %v1450 = vunpack.c.l.b16 %v1192
    %v1451 = vunpack.c.h.b16 %v1192
    %v1452 = vunpack.c.l.b16 %v1193
    %v1453 = vunpack.c.h.b16 %v1193
    %v1454 = vunpack.c.l.b16 %v1194
    %v1455 = vunpack.c.h.b16 %v1194
    %v1456 = vunpack.c.l.b16 %v1195
    %v1457 = vunpack.c.h.b16 %v1195
    %v1458 = vunpack.c.l.b16 %v1196
    %v1459 = vunpack.c.h.b16 %v1196
    %v1460 = vunpack.c.l.b16 %v1197
    %v1461 = vunpack.c.h.b16 %v1197
    %v1462 = vunpack.c.l.b16 %v1198
    %v1463 = vunpack.c.h.b16 %v1198
    %v1464 = vunpack.c.l.b16 %v1199
    %v1465 = vunpack.c.h.b16 %v1199
    %v1466 = vunpack.c.l.b16 %v1200
    %v1467 = vunpack.c.h.b16 %v1200
    %v1468 = vunpack.c.l.b16 %v1201
    %v1469 = vunpack.c.h.b16 %v1201
    %v1470 = vunpack.c.l.b16 %v1202
    %v1471 = vunpack.c.h.b16 %v1202
    %v1472 = vunpack.c.l.b16 %v1203
    %v1473 = vunpack.c.h.b16 %v1203
    %v1474 = vunpack.c.l.b16 %v1204
    %v1475 = vunpack.c.h.b16 %v1204
    %v1476 = vunpack.c.l.b16 %v1205
    %v1477 = vunpack.c.h.b16 %v1205
    %v1478 = vunpack.c.l.b16 %v1206
    %v1479 = vunpack.c.h.b16 %v1206
    %v1480 = vunpack.c.l.b16 %v1207
    %v1481 = vunpack.c.h.b16 %v1207
    %v1482 = vunpack.c.l.b16 %v1208
    %v1483 = vunpack.c.h.b16 %v1208
    %v1484 = vunpack.c.l.b16 %v1209
    %v1485 = vunpack.c.h.b16 %v1209
    %v1486 = vunpack.c.l.b16 %v1210
    %v1487 = vunpack.c.h.b16 %v1210
    %v1488 = vunpack.c.l.b16 %v1211
    %v1489 = vunpack.c.h.b16 %v1211
    %v1490 = vunpack.c.l.b16 %v1212
    %v1491 = vunpack.c.h.b16 %v1212
    %v1492 = vunpack.c.l.b16 %v1213
    %v1493 = vunpack.c.h.b16 %v1213
    %v1494 = vunpack.c.l.b16 %v1214
    %v1495 = vunpack.c.h.b16 %v1214
    %v1496 = vunpack.c.l.b16 %v1215
    %v1497 = vunpack.c.h.b16 %v1215
    %v1498 = vunpack.c.l.b16 %v1216
    %v1499 = vunpack.c.h.b16 %v1216
    %v1500 = vunpack.c.l.b16 %v1217
    %v1501 = vunpack.c.h.b16 %v1217
    %v1502 = vunpack.c.l.b16 %v1218
    %v1503 = vunpack.c.h.b16 %v1218
    %v1504 = vunpack.c.l.b16 %v1219
    %v1505 = vunpack.c.h.b16 %v1219
    %v1506 = vunpack.c.l.b16 %v1220
    %v1507 = vunpack.c.h.b16 %v1220
    %v1508 = vunpack.c.l.b16 %v1221
    %v1509 = vunpack.c.h.b16 %v1221
    %v1510 = vunpack.c.l.b16 %v1222
    %v1511 = vunpack.c.h.b16 %v1222
    %v1512 = vunpack.c.l.b16 %v1223
    %v1513 = vunpack.c.h.b16 %v1223
    %v1514 = vunpack.c.l.b16 %v1224
    %v1515 = vunpack.c.h.b16 %v1224
    %v1516 = vunpack.c.l.b16 %v1225
    %v1517 = vunpack.c.h.b16 %v1225
    %v1518 = vunpack.c.l.b16 %v1226
    %v1519 = vunpack.c.h.b16 %v1226
    %v1520 = vunpack.c.l.b16 %v1227
    %v1521 = vunpack.c.h.b16 %v1227
    %v1522 = vunpack.c.l.b16 %v1228
    %v1523 = vunpack.c.h.b16 %v1228
    %v1524 = vunpack.c.l.b16 %v1229
    %v1525 = vunpack.c.h.b16 %v1229
    %v1526 = vunpack.c.l.b16 %v1230
    %v1527 = vunpack.c.h.b16 %v1230
    %v1528 = vunpack.c.l.b16 %v1231
    %v1529 = vunpack.c.h.b16 %v1231
    %v1530 = vunpack.c.l.b16 %v1232
    %v1531 = vunpack.c.h.b16 %v1232
    %v1532 = vunpack.c.l.b16 %v1233
    %v1533 = vunpack.c.h.b16 %v1233
    %v1534 = vunpack.c.l.b16 %v1234
    %v1535 = vunpack.c.h.b16 %v1234
    %v1536 = vunpack.c.l.b16 %v1235
    %v1537 = vunpack.c.h.b16 %v1235
    %v1538 = vunpack.c.l.b16 %v1236
    %v1539 = vunpack.c.h.b16 %v1236
    %v1540 = vunpack.c.l.b16 %v1237
    %v1541 = vunpack.c.h.b16 %v1237
    %v1542 = vunpack.c.l.b16 %v1238
    %v1543 = vunpack.c.h.b16 %v1238
    %v1544 = vunpack.c.l.b16 %v1239
    %v1545 = vunpack.c.h.b16 %v1239
    %v1546 = vunpack.c.l.b16 %v1240
    %v1547 = vunpack.c.h.b16 %v1240
    %v1548 = vunpack.c.l.b16 %v1241
    %v1549 = vunpack.c.h.b16 %v1241
    %v1550 = vunpack.c.l.b16 %v1242
    %v1551 = vunpack.c.h.b16 %v1242
    %v1552 = vunpack.c.l.b16 %v1243
    %v1553 = vunpack.c.h.b16 %v1243
    %v1554 = vunpack.c.l.b16 %v1244
    %v1555 = vunpack.c.h.b16 %v1244
    %v1556 = vunpack.c.l.b16 %v1245
    %v1557 = vunpack.c.h.b16 %v1245
    %v1558 = vunpack.c.l.b16 %v1246
    %v1559 = vunpack.c.h.b16 %v1246
    %v1560 = vunpack.c.l.b16 %v1247
    %v1561 = vunpack.c.h.b16 %v1247
    %v1562 = vunpack.c.l.b16 %v1248
    %v1563 = vunpack.c.h.b16 %v1248
    %v1564 = vunpack.c.l.b16 %v1249
    %v1565 = vunpack.c.h.b16 %v1249
    %v1566 = vunpack.c.l.b16 %v1250
    %v1567 = vunpack.c.h.b16 %v1250
    %v1568 = vunpack.c.l.b16 %v1251
    %v1569 = vunpack.c.h.b16 %v1251
    %v1570 = vunpack.c.l.b16 %v1252
    %v1571 = vunpack.c.h.b16 %v1252
    %v1572 = vunpack.c.l.b16 %v1253
    %v1573 = vunpack.c.h.b16 %v1253
    %v1574 = vunpack.c.l.b16 %v1254
    %v1575 = vunpack.c.h.b16 %v1254
    %v1576 = vunpack.c.l.b16 %v1255
    %v1577 = vunpack.c.h.b16 %v1255
    %v1578 = vunpack.c.l.b16 %v1256
    %v1579 = vunpack.c.h.b16 %v1256
    %v1580 = vunpack.c.l.b16 %v1257
    %v1581 = vunpack.c.h.b16 %v1257
    %v1582 = vunpack.c.l.b16 %v1258
    %v1583 = vunpack.c.h.b16 %v1258
    %v1584 = vunpack.c.l.b16 %v1259
    %v1585 = vunpack.c.h.b16 %v1259
    %v1586 = vunpack.c.l.b16 %v1260
    %v1587 = vunpack.c.h.b16 %v1260
    %v1588 = vunpack.c.l.b16 %v1261
    %v1589 = vunpack.c.h.b16 %v1261
    %v1590 = vunpack.c.l.b16 %v1262
    %v1591 = vunpack.c.h.b16 %v1262
    %v1592 = vunpack.c.l.b16 %v1263
    %v1593 = vunpack.c.h.b16 %v1263
    %v1594 = vunpack.c.l.b16 %v1264
    %v1595 = vunpack.c.h.b16 %v1264
    %v1596 = vunpack.c.l.b16 %v1265
    %v1597 = vunpack.c.h.b16 %v1265
    %v1598 = vunpack.c.l.b16 %v1266
    %v1599 = vunpack.c.h.b16 %v1266
    %v1600 = vunpack.c.l.b16 %v1267
    %v1601 = vunpack.c.h.b16 %v1267
    %v1602 = vunpack.c.l.b16 %v1268
    %v1603 = vunpack.c.h.b16 %v1268
    %v1604 = vunpack.c.l.b16 %v1269
    %v1605 = vunpack.c.h.b16 %v1269
    %v1606 = vunpack.c.l.b16 %v1270
    %v1607 = vunpack.c.h.b16 %v1270
    %v1608 = vunpack.c.l.b16 %v1271
    %v1609 = vunpack.c.h.b16 %v1271
    %v1610 = vunpack.c.l.b16 %v1272
    %v1611 = vunpack.c.h.b16 %v1272
    %v1612 = vunpack.c.l.b16 %v1273
    %v1613 = vunpack.c.h.b16 %v1273
    %v1614 = vunpack.c.l.b16 %v1274
    %v1615 = vunpack.c.h.b16 %v1274
    %v1616 = vunpack.c.l.b16 %v1275
    %v1617 = vunpack.c.h.b16 %v1275
    %v1618 = vunpack.c.l.b16 %v1276
    %v1619 = vunpack.c.h.b16 %v1276
    %v1620 = vunpack.c.l.b16 %v1277
    %v1621 = vunpack.c.h.b16 %v1277
    %v1622 = vunpack.c.l.b16 %v1278
    %v1623 = vunpack.c.h.b16 %v1278
    %v1624 = vunpack.c.l.b16 %v1279
    %v1625 = vunpack.c.h.b16 %v1279
    %v1626 = vunpack.c.l.b16 %v1280
    %v1627 = vunpack.c.h.b16 %v1280
    %v1628 = vunpack.c.l.b16 %v1281
    %v1629 = vunpack.c.h.b16 %v1281
    %v1630 = vunpack.c.l.b16 %v1282
    %v1631 = vunpack.c.h.b16 %v1282
    %v1632 = vunpack.c.l.b16 %v1283
    %v1633 = vunpack.c.h.b16 %v1283
    %v1634 = vunpack.c.l.b16 %v1284
    %v1635 = vunpack.c.h.b16 %v1284
    %v1636 = vunpack.c.l.b16 %v1285
    %v1637 = vunpack.c.h.b16 %v1285
    %v1638 = vunpack.c.l.b16 %v1286
    %v1639 = vunpack.c.h.b16 %v1286
    %v1640 = vunpack.c.l.b16 %v1287
    %v1641 = vunpack.c.h.b16 %v1287
    %v1642 = vunpack.c.l.b16 %v1288
    %v1643 = vunpack.c.h.b16 %v1288
    %v1644 = vunpack.c.l.b16 %v1289
    %v1645 = vunpack.c.h.b16 %v1289
    %v1646 = vunpack.c.l.b16 %v1290
    %v1647 = vunpack.c.h.b16 %v1290
    %v1648 = vunpack.c.l.b16 %v1291
    %v1649 = vunpack.c.h.b16 %v1291
    %v1650 = vunpack.c.l.b16 %v1292
    %v1651 = vunpack.c.h.b16 %v1292
    %v1652 = vunpack.c.l.b16 %v1293
    %v1653 = vunpack.c.h.b16 %v1293
    %v1654 = vunpack.c.l.b16 %v1294
    %v1655 = vunpack.c.h.b16 %v1294
    %v1656 = vunpack.c.l.b16 %v1295
    %v1657 = vunpack.c.h.b16 %v1295
    %v1658 = vunpack.c.l.b16 %v1296
    %v1659 = vunpack.c.h.b16 %v1296
    %v1660 = vunpack.c.l.b16 %v1297
    %v1661 = vunpack.c.h.b16 %v1297
    %v1662 = vunpack.c.l.b16 %v1298
    %v1663 = vunpack.c.h.b16 %v1298
    %v1664 = vunpack.c.l.b16 %v1299
    %v1665 = vunpack.c.h.b16 %v1299
    %v1666 = vunpack.c.l.b16 %v1300
    %v1667 = vunpack.c.h.b16 %v1300
    %v1668 = vunpack.c.l.b16 %v1301
    %v1669 = vunpack.c.h.b16 %v1301
    %v1670 = vunpack.c.l.b16 %v1302
    %v1671 = vunpack.c.h.b16 %v1302
    %v1672 = vunpack.c.l.b16 %v1303
    %v1673 = vunpack.c.h.b16 %v1303
    %v1674 = vunpack.c.l.b16 %v1304
    %v1675 = vunpack.c.h.b16 %v1304
    %v1676 = vunpack.c.l.b16 %v1305
    %v1677 = vunpack.c.h.b16 %v1305
    %v1678 = vunpack.c.l.b16 %v1306
    %v1679 = vunpack.c.h.b16 %v1306
    %v1680 = vunpack.c.l.b16 %v1307
    %v1681 = vunpack.c.h.b16 %v1307
    %v1682 = vunpack.c.l.b16 %v1308
    %v1683 = vunpack.c.h.b16 %v1308
    %v1684 = vunpack.c.l.b16 %v1309
    %v1685 = vunpack.c.h.b16 %v1309
    %v1686 = vunpack.c.l.b16 %v1310
    %v1687 = vunpack.c.h.b16 %v1310
    %v1688 = vunpack.c.l.b16 %v1311
    %v1689 = vunpack.c.h.b16 %v1311
    %v1690 = vunpack.c.l.b16 %v1312
    %v1691 = vunpack.c.h.b16 %v1312
    %v1692 = vunpack.c.l.b16 %v1313
    %v1693 = vunpack.c.h.b16 %v1313
    %v1694 = vunpack.c.l.b16 %v1314
    %v1695 = vunpack.c.h.b16 %v1314
    %v1696 = vunpack.c.l.b16 %v1315
    %v1697 = vunpack.c.h.b16 %v1315
    %v1698 = vunpack.c.l.b16 %v1316
    %v1699 = vunpack.c.h.b16 %v1316
    %v1700 = vunpack.c.l.b16 %v1317
    %v1701 = vunpack.c.h.b16 %v1317
    %v1702 = vpack.c.b16 %v1450, %v1446
    %v1703 = vpack.c.b16 %v1451, %v1447
    %v1704 = vpack.c.b16 %v1452, %v1448
    %v1705 = vpack.c.b16 %v1453, %v1449
    %v1706 = vpack.c.b16 %v1458, %v1454
    %v1707 = vpack.c.b16 %v1459, %v1455
    %v1708 = vpack.c.b16 %v1460, %v1456
    %v1709 = vpack.c.b16 %v1461, %v1457
    %v1710 = vpack.c.b16 %v1466, %v1462
    %v1711 = vpack.c.b16 %v1467, %v1463
    %v1712 = vpack.c.b16 %v1468, %v1464
    %v1713 = vpack.c.b16 %v1469, %v1465
    %v1714 = vpack.c.b16 %v1474, %v1470
    %v1715 = vpack.c.b16 %v1475, %v1471
    %v1716 = vpack.c.b16 %v1476, %v1472
    %v1717 = vpack.c.b16 %v1477, %v1473
    %v1718 = vpack.c.b16 %v1482, %v1478
    %v1719 = vpack.c.b16 %v1483, %v1479
    %v1720 = vpack.c.b16 %v1484, %v1480
    %v1721 = vpack.c.b16 %v1485, %v1481
    %v1722 = vpack.c.b16 %v1490, %v1486
    %v1723 = vpack.c.b16 %v1491, %v1487
    %v1724 = vpack.c.b16 %v1492, %v1488
    %v1725 = vpack.c.b16 %v1493, %v1489
    %v1726 = vpack.c.b16 %v1498, %v1494
    %v1727 = vpack.c.b16 %v1499, %v1495
    %v1728 = vpack.c.b16 %v1500, %v1496
    %v1729 = vpack.c.b16 %v1501, %v1497
    %v1730 = vpack.c.b16 %v1506, %v1502
    %v1731 = vpack.c.b16 %v1507, %v1503
    %v1732 = vpack.c.b16 %v1508, %v1504
    %v1733 = vpack.c.b16 %v1509, %v1505
    %v1734 = vpack.c.b16 %v1514, %v1510
    %v1735 = vpack.c.b16 %v1515, %v1511
    %v1736 = vpack.c.b16 %v1516, %v1512
    %v1737 = vpack.c.b16 %v1517, %v1513
    %v1738 = vpack.c.b16 %v1522, %v1518
    %v1739 = vpack.c.b16 %v1523, %v1519
    %v1740 = vpack.c.b16 %v1524, %v1520
    %v1741 = vpack.c.b16 %v1525, %v1521
    %v1742 = vpack.c.b16 %v1530, %v1526
    %v1743 = vpack.c.b16 %v1531, %v1527
    %v1744 = vpack.c.b16 %v1532, %v1528
    %v1745 = vpack.c.b16 %v1533, %v1529
    %v1746 = vpack.c.b16 %v1538, %v1534
    %v1747 = vpack.c.b16 %v1539, %v1535
    %v1748 = vpack.c.b16 %v1540, %v1536
    %v1749 = vpack.c.b16 %v1541, %v1537
    %v1750 = vpack.c.b16 %v1546, %v1542
    %v1751 = vpack.c.b16 %v1547, %v1543
    %v1752 = vpack.c.b16 %v1548, %v1544
    %v1753 = vpack.c.b16 %v1549, %v1545
    %v1754 = vpack.c.b16 %v1554, %v1550
    %v1755 = vpack.c.b16 %v1555, %v1551
    %v1756 = vpack.c.b16 %v1556, %v1552
    %v1757 = vpack.c.b16 %v1557, %v1553
    %v1758 = vpack.c.b16 %v1562, %v1558
    %v1759 = vpack.c.b16 %v1563, %v1559
    %v1760 = vpack.c.b16 %v1564, %v1560
    %v1761 = vpack.c.b16 %v1565, %v1561
    %v1762 = vpack.c.b16 %v1570, %v1566
    %v1763 = vpack.c.b16 %v1571, %v1567
    %v1764 = vpack.c.b16 %v1572, %v1568
    %v1765 = vpack.c.b16 %v1573, %v1569
    %v1766 = vpack.c.b16 %v1578, %v1574
    %v1767 = vpack.c.b16 %v1579, %v1575
    %v1768 = vpack.c.b16 %v1580, %v1576
    %v1769 = vpack.c.b16 %v1581, %v1577
    %v1770 = vpack.c.b16 %v1586, %v1582
    %v1771 = vpack.c.b16 %v1587, %v1583
    %v1772 = vpack.c.b16 %v1588, %v1584
    %v1773 = vpack.c.b16 %v1589, %v1585
    %v1774 = vpack.c.b16 %v1594, %v1590
    %v1775 = vpack.c.b16 %v1595, %v1591
    %v1776 = vpack.c.b16 %v1596, %v1592
    %v1777 = vpack.c.b16 %v1597, %v1593
    %v1778 = vpack.c.b16 %v1602, %v1598
    %v1779 = vpack.c.b16 %v1603, %v1599
    %v1780 = vpack.c.b16 %v1604, %v1600
    %v1781 = vpack.c.b16 %v1605, %v1601
    %v1782 = vpack.c.b16 %v1610, %v1606
    %v1783 = vpack.c.b16 %v1611, %v1607
    %v1784 = vpack.c.b16 %v1612, %v1608
    %v1785 = vpack.c.b16 %v1613, %v1609
    %v1786 = vpack.c.b16 %v1618, %v1614
    %v1787 = vpack.c.b16 %v1619, %v1615
    %v1788 = vpack.c.b16 %v1620, %v1616
    %v1789 = vpack.c.b16 %v1621, %v1617
    %v1790 = vpack.c.b16 %v1626, %v1622
    %v1791 = vpack.c.b16 %v1627, %v1623
    %v1792 = vpack.c.b16 %v1628, %v1624
    %v1793 = vpack.c.b16 %v1629, %v1625
    %v1794 = vpack.c.b16 %v1634, %v1630
    %v1795 = vpack.c.b16 %v1635, %v1631
    %v1796 = vpack.c.b16 %v1636, %v1632
    %v1797 = vpack.c.b16 %v1637, %v1633
    %v1798 = vpack.c.b16 %v1642, %v1638
    %v1799 = vpack.c.b16 %v1643, %v1639
    %v1800 = vpack.c.b16 %v1644, %v1640
    %v1801 = vpack.c.b16 %v1645, %v1641
    %v1802 = vpack.c.b16 %v1650, %v1646
    %v1803 = vpack.c.b16 %v1651, %v1647
    %v1804 = vpack.c.b16 %v1652, %v1648
    %v1805 = vpack.c.b16 %v1653, %v1649
    %v1806 = vpack.c.b16 %v1658, %v1654
    %v1807 = vpack.c.b16 %v1659, %v1655
    %v1808 = vpack.c.b16 %v1660, %v1656
    %v1809 = vpack.c.b16 %v1661, %v1657
    %v1810 = vpack.c.b16 %v1666, %v1662
    %v1811 = vpack.c.b16 %v1667, %v1663
    %v1812 = vpack.c.b16 %v1668, %v1664
    %v1813 = vpack.c.b16 %v1669, %v1665
    %v1814 = vpack.c.b16 %v1674, %v1670
    %v1815 = vpack.c.b16 %v1675, %v1671
    %v1816 = vpack.c.b16 %v1676, %v1672
    %v1817 = vpack.c.b16 %v1677, %v1673
    %v1818 = vpack.c.b16 %v1682, %v1678
    %v1819 = vpack.c.b16 %v1683, %v1679
    %v1820 = vpack.c.b16 %v1684, %v1680
    %v1821 = vpack.c.b16 %v1685, %v1681
    %v1822 = vpack.c.b16 %v1690, %v1686
    %v1823 = vpack.c.b16 %v1691, %v1687
    %v1824 = vpack.c.b16 %v1692, %v1688
    %v1825 = vpack.c.b16 %v1693, %v1689
    %v1826 = vpack.c.b16 %v1698, %v1694
    %v1827 = vpack.c.b16 %v1699, %v1695
    %v1828 = vpack.c.b16 %v1700, %v1696
    %v1829 = vpack.c.b16 %v1701, %v1697
    %1958 = vmatprep.subr.bf16.mxu0 %v1731
    %1959 = vmatpush1.bf16.msra.mxu0 %v1730
    %1960 = vmatprep.subr.bf16.mxu0 %v1727
    %1961 = vmatpush1.bf16.msra.mxu0 %v1726
    %1962 = vmatprep.subr.bf16.mxu0 %v1723
    %1963 = vmatpush1.bf16.msra.mxu0 %v1722
    %1964 = vmatprep.subr.bf16.mxu0 %v1719
    %1965 = vmatpush1.bf16.msra.mxu0 %v1718
    %1966 = vmatprep.subr.bf16.mxu0 %v1715
    %1967 = vmatpush1.bf16.msra.mxu0 %v1714
    %1968 = vmatprep.subr.bf16.mxu0 %v1711
    %1969 = vmatpush1.bf16.msra.mxu0 %v1710
    %1970 = vmatprep.subr.bf16.mxu0 %v1707
    %1971 = vmatpush1.bf16.msra.mxu0 %v1706
    %1972 = vmatprep.subr.bf16.mxu0 %v1703
    %1973 = vmatpush1.bf16.msra.mxu0 %v1702
    %1974 = vmatprep.subr.bf16.mxu0 %v1763
    %1975 = vmatpush2.bf16.msra.mxu0 %v1762
    %1976 = vmatprep.subr.bf16.mxu0 %v1759
    %1977 = vmatpush2.bf16.msra.mxu0 %v1758
    %1978 = vmatprep.subr.bf16.mxu0 %v1755
    %1979 = vmatpush2.bf16.msra.mxu0 %v1754
    %1980 = vmatprep.subr.bf16.mxu0 %v1751
    %1981 = vmatpush2.bf16.msra.mxu0 %v1750
    %1982 = vmatprep.subr.bf16.mxu0 %v1747
    %1983 = vmatpush2.bf16.msra.mxu0 %v1746
    %1984 = vmatprep.subr.bf16.mxu0 %v1743
    %1985 = vmatpush2.bf16.msra.mxu0 %v1742
    %1986 = vmatprep.subr.bf16.mxu0 %v1739
    %1987 = vmatpush2.bf16.msra.mxu0 %v1738
    %1988 = vmatprep.subr.bf16.mxu0 %v1735
    %1989 = vmatpush2.bf16.msra.mxu0 %v1734
    %1990 = vmatprep.mubr.bf16.mxu0 %v1053
    %1991 = vmatmul.mubr.bf16.gmra.mxu0 %v1052
    %v1992 = vpop.f32.mrf.mxu0
    %v1993 = vadd.f32 0.0, %v1992
    %v1994 = vpop.f32.mrf.mxu0
    %v1995 = vadd.f32 0.0, %v1994
    %v1996 = vpop.f32.mrf.mxu0
    %v1997 = vpop.f32.mrf.mxu0
    %1998 = vdwg.mxu0
    %1999 = vmatprep.subr.bf16.mxu0 %v1795
    %2000 = vmatpush1.bf16.msra.mxu0 %v1794
    %2001 = vmatprep.subr.bf16.mxu0 %v1791
    %2002 = vmatpush1.bf16.msra.mxu0 %v1790
    %2003 = vmatprep.subr.bf16.mxu0 %v1787
    %2004 = vmatpush1.bf16.msra.mxu0 %v1786
    %2005 = vmatprep.subr.bf16.mxu0 %v1783
    %2006 = vmatpush1.bf16.msra.mxu0 %v1782
    %2007 = vmatprep.subr.bf16.mxu0 %v1779
    %2008 = vmatpush1.bf16.msra.mxu0 %v1778
    %2009 = vmatprep.subr.bf16.mxu0 %v1775
    %2010 = vmatpush1.bf16.msra.mxu0 %v1774
    %2011 = vmatprep.subr.bf16.mxu0 %v1771
    %2012 = vmatpush1.bf16.msra.mxu0 %v1770
    %2013 = vmatprep.subr.bf16.mxu0 %v1767
    %2014 = vmatpush1.bf16.msra.mxu0 %v1766
    %2015 = vmatprep.subr.bf16.mxu0 %v1827
    %2016 = vmatpush2.bf16.msra.mxu0 %v1826
    %2017 = vmatprep.subr.bf16.mxu0 %v1823
    %2018 = vmatpush2.bf16.msra.mxu0 %v1822
    %2019 = vmatprep.subr.bf16.mxu0 %v1819
    %2020 = vmatpush2.bf16.msra.mxu0 %v1818
    %2021 = vmatprep.subr.bf16.mxu0 %v1815
    %2022 = vmatpush2.bf16.msra.mxu0 %v1814
    %2023 = vmatprep.subr.bf16.mxu0 %v1811
    %2024 = vmatpush2.bf16.msra.mxu0 %v1810
    %2025 = vmatprep.subr.bf16.mxu0 %v1807
    %2026 = vmatpush2.bf16.msra.mxu0 %v1806
    %2027 = vmatprep.subr.bf16.mxu0 %v1803
    %2028 = vmatpush2.bf16.msra.mxu0 %v1802
    %2029 = vmatprep.subr.bf16.mxu0 %v1799
    %2030 = vmatpush2.bf16.msra.mxu0 %v1798
    %2031 = vmatprep.mubr.bf16.mxu0 %v1055
    %2032 = vmatmul.mubr.bf16.gmra.mxu0 %v1054
    %v2033 = vpop.f32.mrf.mxu0
    %v2034 = vadd.f32 %v1993, %v2033
    %v2035 = vpop.f32.mrf.mxu0
    %v2036 = vadd.f32 %v1995, %v2035
    %v2037 = vpop.f32.mrf.mxu0
    %v2038 = vpop.f32.mrf.mxu0
    %2039 = vdwg.mxu0
    %2040 = vmatprep.subr.bf16.mxu0 %v1733
    %2041 = vmatpush1.bf16.msra.mxu0 %v1732
    %2042 = vmatprep.subr.bf16.mxu0 %v1729
    %2043 = vmatpush1.bf16.msra.mxu0 %v1728
    %2044 = vmatprep.subr.bf16.mxu0 %v1725
    %2045 = vmatpush1.bf16.msra.mxu0 %v1724
    %2046 = vmatprep.subr.bf16.mxu0 %v1721
    %2047 = vmatpush1.bf16.msra.mxu0 %v1720
    %2048 = vmatprep.subr.bf16.mxu0 %v1717
    %2049 = vmatpush1.bf16.msra.mxu0 %v1716
    %2050 = vmatprep.subr.bf16.mxu0 %v1713
    %2051 = vmatpush1.bf16.msra.mxu0 %v1712
    %2052 = vmatprep.subr.bf16.mxu0 %v1709
    %2053 = vmatpush1.bf16.msra.mxu0 %v1708
    %2054 = vmatprep.subr.bf16.mxu0 %v1705
    %2055 = vmatpush1.bf16.msra.mxu0 %v1704
    %2056 = vmatprep.subr.bf16.mxu0 %v1765
    %2057 = vmatpush2.bf16.msra.mxu0 %v1764
    %2058 = vmatprep.subr.bf16.mxu0 %v1761
    %2059 = vmatpush2.bf16.msra.mxu0 %v1760
    %2060 = vmatprep.subr.bf16.mxu0 %v1757
    %2061 = vmatpush2.bf16.msra.mxu0 %v1756
    %2062 = vmatprep.subr.bf16.mxu0 %v1753
    %2063 = vmatpush2.bf16.msra.mxu0 %v1752
    %2064 = vmatprep.subr.bf16.mxu0 %v1749
    %2065 = vmatpush2.bf16.msra.mxu0 %v1748
    %2066 = vmatprep.subr.bf16.mxu0 %v1745
    %2067 = vmatpush2.bf16.msra.mxu0 %v1744
    %2068 = vmatprep.subr.bf16.mxu0 %v1741
    %2069 = vmatpush2.bf16.msra.mxu0 %v1740
    %2070 = vmatprep.subr.bf16.mxu0 %v1737
    %2071 = vmatpush2.bf16.msra.mxu0 %v1736
    %2072 = vmatprep.mubr.bf16.mxu0 %v1053
    %2073 = vmatmul.mubr.bf16.gmra.mxu0 %v1052
    %v2074 = vpop.f32.mrf.mxu0
    %v2075 = vadd.f32 0.0, %v2074
    %v2076 = vpop.f32.mrf.mxu0
    %v2077 = vadd.f32 0.0, %v2076
    %v2078 = vpop.f32.mrf.mxu0
    %v2079 = vpop.f32.mrf.mxu0
    %2080 = vdwg.mxu0
    %2081 = vmatprep.subr.bf16.mxu0 %v1797
    %2082 = vmatpush1.bf16.msra.mxu0 %v1796
    %2083 = vmatprep.subr.bf16.mxu0 %v1793
    %2084 = vmatpush1.bf16.msra.mxu0 %v1792
    %2085 = vmatprep.subr.bf16.mxu0 %v1789
    %2086 = vmatpush1.bf16.msra.mxu0 %v1788
    %2087 = vmatprep.subr.bf16.mxu0 %v1785
    %2088 = vmatpush1.bf16.msra.mxu0 %v1784
    %2089 = vmatprep.subr.bf16.mxu0 %v1781
    %2090 = vmatpush1.bf16.msra.mxu0 %v1780
    %2091 = vmatprep.subr.bf16.mxu0 %v1777
    %2092 = vmatpush1.bf16.msra.mxu0 %v1776
    %2093 = vmatprep.subr.bf16.mxu0 %v1773
    %2094 = vmatpush1.bf16.msra.mxu0 %v1772
    %2095 = vmatprep.subr.bf16.mxu0 %v1769
    %2096 = vmatpush1.bf16.msra.mxu0 %v1768
    %2097 = vmatprep.subr.bf16.mxu0 %v1829
    %2098 = vmatpush2.bf16.msra.mxu0 %v1828
    %2099 = vmatprep.subr.bf16.mxu0 %v1825
    %2100 = vmatpush2.bf16.msra.mxu0 %v1824
    %2101 = vmatprep.subr.bf16.mxu0 %v1821
    %2102 = vmatpush2.bf16.msra.mxu0 %v1820
    %2103 = vmatprep.subr.bf16.mxu0 %v1817
    %2104 = vmatpush2.bf16.msra.mxu0 %v1816
    %2105 = vmatprep.subr.bf16.mxu0 %v1813
    %2106 = vmatpush2.bf16.msra.mxu0 %v1812
    %2107 = vmatprep.subr.bf16.mxu0 %v1809
    %2108 = vmatpush2.bf16.msra.mxu0 %v1808
    %2109 = vmatprep.subr.bf16.mxu0 %v1805
    %2110 = vmatpush2.bf16.msra.mxu0 %v1804
    %2111 = vmatprep.subr.bf16.mxu0 %v1801
    %2112 = vmatpush2.bf16.msra.mxu0 %v1800
    %2113 = vmatprep.mubr.bf16.mxu0 %v1055
    %2114 = vmatmul.mubr.bf16.gmra.mxu0 %v1054
    %v2115 = vpop.f32.mrf.mxu0
    %v2116 = vadd.f32 %v2075, %v2115
    %v2117 = vpop.f32.mrf.mxu0
    %v2118 = vadd.f32 %v2077, %v2117
    %v2119 = vpop.f32.mrf.mxu0
    %v2120 = vpop.f32.mrf.mxu0
    %2121 = vdwg.mxu0
    %v2250 = vunpack.c.l.b16 %v1060
    %v2251 = vunpack.c.h.b16 %v1060
    %v2252 = vunpack.c.l.b16 %v1061
    %v2253 = vunpack.c.h.b16 %v1061
    %v2254 = vunpack.c.l.b16 %v1062
    %v2255 = vunpack.c.h.b16 %v1062
    %v2256 = vunpack.c.l.b16 %v1063
    %v2257 = vunpack.c.h.b16 %v1063
    %v2258 = vunpack.c.l.b16 %v1064
    %v2259 = vunpack.c.h.b16 %v1064
    %v2260 = vunpack.c.l.b16 %v1065
    %v2261 = vunpack.c.h.b16 %v1065
    %v2262 = vunpack.c.l.b16 %v1066
    %v2263 = vunpack.c.h.b16 %v1066
    %v2264 = vunpack.c.l.b16 %v1067
    %v2265 = vunpack.c.h.b16 %v1067
    %v2266 = vunpack.c.l.b16 %v1068
    %v2267 = vunpack.c.h.b16 %v1068
    %v2268 = vunpack.c.l.b16 %v1069
    %v2269 = vunpack.c.h.b16 %v1069
    %v2270 = vunpack.c.l.b16 %v1070
    %v2271 = vunpack.c.h.b16 %v1070
    %v2272 = vunpack.c.l.b16 %v1071
    %v2273 = vunpack.c.h.b16 %v1071
    %v2274 = vunpack.c.l.b16 %v1072
    %v2275 = vunpack.c.h.b16 %v1072
    %v2276 = vunpack.c.l.b16 %v1073
    %v2277 = vunpack.c.h.b16 %v1073
    %v2278 = vunpack.c.l.b16 %v1074
    %v2279 = vunpack.c.h.b16 %v1074
    %v2280 = vunpack.c.l.b16 %v1075
    %v2281 = vunpack.c.h.b16 %v1075
    %v2282 = vunpack.c.l.b16 %v1076
    %v2283 = vunpack.c.h.b16 %v1076
    %v2284 = vunpack.c.l.b16 %v1077
    %v2285 = vunpack.c.h.b16 %v1077
    %v2286 = vunpack.c.l.b16 %v1078
    %v2287 = vunpack.c.h.b16 %v1078
    %v2288 = vunpack.c.l.b16 %v1079
    %v2289 = vunpack.c.h.b16 %v1079
    %v2290 = vunpack.c.l.b16 %v1080
    %v2291 = vunpack.c.h.b16 %v1080
    %v2292 = vunpack.c.l.b16 %v1081
    %v2293 = vunpack.c.h.b16 %v1081
    %v2294 = vunpack.c.l.b16 %v1082
    %v2295 = vunpack.c.h.b16 %v1082
    %v2296 = vunpack.c.l.b16 %v1083
    %v2297 = vunpack.c.h.b16 %v1083
    %v2298 = vunpack.c.l.b16 %v1084
    %v2299 = vunpack.c.h.b16 %v1084
    %v2300 = vunpack.c.l.b16 %v1085
    %v2301 = vunpack.c.h.b16 %v1085
    %v2302 = vunpack.c.l.b16 %v1086
    %v2303 = vunpack.c.h.b16 %v1086
    %v2304 = vunpack.c.l.b16 %v1087
    %v2305 = vunpack.c.h.b16 %v1087
    %v2306 = vunpack.c.l.b16 %v1088
    %v2307 = vunpack.c.h.b16 %v1088
    %v2308 = vunpack.c.l.b16 %v1089
    %v2309 = vunpack.c.h.b16 %v1089
    %v2310 = vunpack.c.l.b16 %v1090
    %v2311 = vunpack.c.h.b16 %v1090
    %v2312 = vunpack.c.l.b16 %v1091
    %v2313 = vunpack.c.h.b16 %v1091
    %v2314 = vunpack.c.l.b16 %v1092
    %v2315 = vunpack.c.h.b16 %v1092
    %v2316 = vunpack.c.l.b16 %v1093
    %v2317 = vunpack.c.h.b16 %v1093
    %v2318 = vunpack.c.l.b16 %v1094
    %v2319 = vunpack.c.h.b16 %v1094
    %v2320 = vunpack.c.l.b16 %v1095
    %v2321 = vunpack.c.h.b16 %v1095
    %v2322 = vunpack.c.l.b16 %v1096
    %v2323 = vunpack.c.h.b16 %v1096
    %v2324 = vunpack.c.l.b16 %v1097
    %v2325 = vunpack.c.h.b16 %v1097
    %v2326 = vunpack.c.l.b16 %v1098
    %v2327 = vunpack.c.h.b16 %v1098
    %v2328 = vunpack.c.l.b16 %v1099
    %v2329 = vunpack.c.h.b16 %v1099
    %v2330 = vunpack.c.l.b16 %v1100
    %v2331 = vunpack.c.h.b16 %v1100
    %v2332 = vunpack.c.l.b16 %v1101
    %v2333 = vunpack.c.h.b16 %v1101
    %v2334 = vunpack.c.l.b16 %v1102
    %v2335 = vunpack.c.h.b16 %v1102
    %v2336 = vunpack.c.l.b16 %v1103
    %v2337 = vunpack.c.h.b16 %v1103
    %v2338 = vunpack.c.l.b16 %v1104
    %v2339 = vunpack.c.h.b16 %v1104
    %v2340 = vunpack.c.l.b16 %v1105
    %v2341 = vunpack.c.h.b16 %v1105
    %v2342 = vunpack.c.l.b16 %v1106
    %v2343 = vunpack.c.h.b16 %v1106
    %v2344 = vunpack.c.l.b16 %v1107
    %v2345 = vunpack.c.h.b16 %v1107
    %v2346 = vunpack.c.l.b16 %v1108
    %v2347 = vunpack.c.h.b16 %v1108
    %v2348 = vunpack.c.l.b16 %v1109
    %v2349 = vunpack.c.h.b16 %v1109
    %v2350 = vunpack.c.l.b16 %v1110
    %v2351 = vunpack.c.h.b16 %v1110
    %v2352 = vunpack.c.l.b16 %v1111
    %v2353 = vunpack.c.h.b16 %v1111
    %v2354 = vunpack.c.l.b16 %v1112
    %v2355 = vunpack.c.h.b16 %v1112
    %v2356 = vunpack.c.l.b16 %v1113
    %v2357 = vunpack.c.h.b16 %v1113
    %v2358 = vunpack.c.l.b16 %v1114
    %v2359 = vunpack.c.h.b16 %v1114
    %v2360 = vunpack.c.l.b16 %v1115
    %v2361 = vunpack.c.h.b16 %v1115
    %v2362 = vunpack.c.l.b16 %v1116
    %v2363 = vunpack.c.h.b16 %v1116
    %v2364 = vunpack.c.l.b16 %v1117
    %v2365 = vunpack.c.h.b16 %v1117
    %v2366 = vunpack.c.l.b16 %v1118
    %v2367 = vunpack.c.h.b16 %v1118
    %v2368 = vunpack.c.l.b16 %v1119
    %v2369 = vunpack.c.h.b16 %v1119
    %v2370 = vunpack.c.l.b16 %v1120
    %v2371 = vunpack.c.h.b16 %v1120
    %v2372 = vunpack.c.l.b16 %v1121
    %v2373 = vunpack.c.h.b16 %v1121
    %v2374 = vunpack.c.l.b16 %v1122
    %v2375 = vunpack.c.h.b16 %v1122
    %v2376 = vunpack.c.l.b16 %v1123
    %v2377 = vunpack.c.h.b16 %v1123
    %v2378 = vunpack.c.l.b16 %v1124
    %v2379 = vunpack.c.h.b16 %v1124
    %v2380 = vunpack.c.l.b16 %v1125
    %v2381 = vunpack.c.h.b16 %v1125
    %v2382 = vunpack.c.l.b16 %v1126
    %v2383 = vunpack.c.h.b16 %v1126
    %v2384 = vunpack.c.l.b16 %v1127
    %v2385 = vunpack.c.h.b16 %v1127
    %v2386 = vunpack.c.l.b16 %v1128
    %v2387 = vunpack.c.h.b16 %v1128
    %v2388 = vunpack.c.l.b16 %v1129
    %v2389 = vunpack.c.h.b16 %v1129
    %v2390 = vunpack.c.l.b16 %v1130
    %v2391 = vunpack.c.h.b16 %v1130
    %v2392 = vunpack.c.l.b16 %v1131
    %v2393 = vunpack.c.h.b16 %v1131
    %v2394 = vunpack.c.l.b16 %v1132
    %v2395 = vunpack.c.h.b16 %v1132
    %v2396 = vunpack.c.l.b16 %v1133
    %v2397 = vunpack.c.h.b16 %v1133
    %v2398 = vunpack.c.l.b16 %v1134
    %v2399 = vunpack.c.h.b16 %v1134
    %v2400 = vunpack.c.l.b16 %v1135
    %v2401 = vunpack.c.h.b16 %v1135
    %v2402 = vunpack.c.l.b16 %v1136
    %v2403 = vunpack.c.h.b16 %v1136
    %v2404 = vunpack.c.l.b16 %v1137
    %v2405 = vunpack.c.h.b16 %v1137
    %v2406 = vunpack.c.l.b16 %v1138
    %v2407 = vunpack.c.h.b16 %v1138
    %v2408 = vunpack.c.l.b16 %v1139
    %v2409 = vunpack.c.h.b16 %v1139
    %v2410 = vunpack.c.l.b16 %v1140
    %v2411 = vunpack.c.h.b16 %v1140
    %v2412 = vunpack.c.l.b16 %v1141
    %v2413 = vunpack.c.h.b16 %v1141
    %v2414 = vunpack.c.l.b16 %v1142
    %v2415 = vunpack.c.h.b16 %v1142
    %v2416 = vunpack.c.l.b16 %v1143
    %v2417 = vunpack.c.h.b16 %v1143
    %v2418 = vunpack.c.l.b16 %v1144
    %v2419 = vunpack.c.h.b16 %v1144
    %v2420 = vunpack.c.l.b16 %v1145
    %v2421 = vunpack.c.h.b16 %v1145
    %v2422 = vunpack.c.l.b16 %v1146
    %v2423 = vunpack.c.h.b16 %v1146
    %v2424 = vunpack.c.l.b16 %v1147
    %v2425 = vunpack.c.h.b16 %v1147
    %v2426 = vunpack.c.l.b16 %v1148
    %v2427 = vunpack.c.h.b16 %v1148
    %v2428 = vunpack.c.l.b16 %v1149
    %v2429 = vunpack.c.h.b16 %v1149
    %v2430 = vunpack.c.l.b16 %v1150
    %v2431 = vunpack.c.h.b16 %v1150
    %v2432 = vunpack.c.l.b16 %v1151
    %v2433 = vunpack.c.h.b16 %v1151
    %v2434 = vunpack.c.l.b16 %v1152
    %v2435 = vunpack.c.h.b16 %v1152
    %v2436 = vunpack.c.l.b16 %v1153
    %v2437 = vunpack.c.h.b16 %v1153
    %v2438 = vunpack.c.l.b16 %v1154
    %v2439 = vunpack.c.h.b16 %v1154
    %v2440 = vunpack.c.l.b16 %v1155
    %v2441 = vunpack.c.h.b16 %v1155
    %v2442 = vunpack.c.l.b16 %v1156
    %v2443 = vunpack.c.h.b16 %v1156
    %v2444 = vunpack.c.l.b16 %v1157
    %v2445 = vunpack.c.h.b16 %v1157
    %v2446 = vunpack.c.l.b16 %v1158
    %v2447 = vunpack.c.h.b16 %v1158
    %v2448 = vunpack.c.l.b16 %v1159
    %v2449 = vunpack.c.h.b16 %v1159
    %v2450 = vunpack.c.l.b16 %v1160
    %v2451 = vunpack.c.h.b16 %v1160
    %v2452 = vunpack.c.l.b16 %v1161
    %v2453 = vunpack.c.h.b16 %v1161
    %v2454 = vunpack.c.l.b16 %v1162
    %v2455 = vunpack.c.h.b16 %v1162
    %v2456 = vunpack.c.l.b16 %v1163
    %v2457 = vunpack.c.h.b16 %v1163
    %v2458 = vunpack.c.l.b16 %v1164
    %v2459 = vunpack.c.h.b16 %v1164
    %v2460 = vunpack.c.l.b16 %v1165
    %v2461 = vunpack.c.h.b16 %v1165
    %v2462 = vunpack.c.l.b16 %v1166
    %v2463 = vunpack.c.h.b16 %v1166
    %v2464 = vunpack.c.l.b16 %v1167
    %v2465 = vunpack.c.h.b16 %v1167
    %v2466 = vunpack.c.l.b16 %v1168
    %v2467 = vunpack.c.h.b16 %v1168
    %v2468 = vunpack.c.l.b16 %v1169
    %v2469 = vunpack.c.h.b16 %v1169
    %v2470 = vunpack.c.l.b16 %v1170
    %v2471 = vunpack.c.h.b16 %v1170
    %v2472 = vunpack.c.l.b16 %v1171
    %v2473 = vunpack.c.h.b16 %v1171
    %v2474 = vunpack.c.l.b16 %v1172
    %v2475 = vunpack.c.h.b16 %v1172
    %v2476 = vunpack.c.l.b16 %v1173
    %v2477 = vunpack.c.h.b16 %v1173
    %v2478 = vunpack.c.l.b16 %v1174
    %v2479 = vunpack.c.h.b16 %v1174
    %v2480 = vunpack.c.l.b16 %v1175
    %v2481 = vunpack.c.h.b16 %v1175
    %v2482 = vunpack.c.l.b16 %v1176
    %v2483 = vunpack.c.h.b16 %v1176
    %v2484 = vunpack.c.l.b16 %v1177
    %v2485 = vunpack.c.h.b16 %v1177
    %v2486 = vunpack.c.l.b16 %v1178
    %v2487 = vunpack.c.h.b16 %v1178
    %v2488 = vunpack.c.l.b16 %v1179
    %v2489 = vunpack.c.h.b16 %v1179
    %v2490 = vunpack.c.l.b16 %v1180
    %v2491 = vunpack.c.h.b16 %v1180
    %v2492 = vunpack.c.l.b16 %v1181
    %v2493 = vunpack.c.h.b16 %v1181
    %v2494 = vunpack.c.l.b16 %v1182
    %v2495 = vunpack.c.h.b16 %v1182
    %v2496 = vunpack.c.l.b16 %v1183
    %v2497 = vunpack.c.h.b16 %v1183
    %v2498 = vunpack.c.l.b16 %v1184
    %v2499 = vunpack.c.h.b16 %v1184
    %v2500 = vunpack.c.l.b16 %v1185
    %v2501 = vunpack.c.h.b16 %v1185
    %v2502 = vunpack.c.l.b16 %v1186
    %v2503 = vunpack.c.h.b16 %v1186
    %v2504 = vunpack.c.l.b16 %v1187
    %v2505 = vunpack.c.h.b16 %v1187
    %v2506 = vpack.c.b16 %v2254, %v2250
    %v2507 = vpack.c.b16 %v2255, %v2251
    %v2508 = vpack.c.b16 %v2256, %v2252
    %v2509 = vpack.c.b16 %v2257, %v2253
    %v2510 = vpack.c.b16 %v2262, %v2258
    %v2511 = vpack.c.b16 %v2263, %v2259
    %v2512 = vpack.c.b16 %v2264, %v2260
    %v2513 = vpack.c.b16 %v2265, %v2261
    %v2514 = vpack.c.b16 %v2270, %v2266
    %v2515 = vpack.c.b16 %v2271, %v2267
    %v2516 = vpack.c.b16 %v2272, %v2268
    %v2517 = vpack.c.b16 %v2273, %v2269
    %v2518 = vpack.c.b16 %v2278, %v2274
    %v2519 = vpack.c.b16 %v2279, %v2275
    %v2520 = vpack.c.b16 %v2280, %v2276
    %v2521 = vpack.c.b16 %v2281, %v2277
    %v2522 = vpack.c.b16 %v2286, %v2282
    %v2523 = vpack.c.b16 %v2287, %v2283
    %v2524 = vpack.c.b16 %v2288, %v2284
    %v2525 = vpack.c.b16 %v2289, %v2285
    %v2526 = vpack.c.b16 %v2294, %v2290
    %v2527 = vpack.c.b16 %v2295, %v2291
    %v2528 = vpack.c.b16 %v2296, %v2292
    %v2529 = vpack.c.b16 %v2297, %v2293
    %v2530 = vpack.c.b16 %v2302, %v2298
    %v2531 = vpack.c.b16 %v2303, %v2299
    %v2532 = vpack.c.b16 %v2304, %v2300
    %v2533 = vpack.c.b16 %v2305, %v2301
    %v2534 = vpack.c.b16 %v2310, %v2306
    %v2535 = vpack.c.b16 %v2311, %v2307
    %v2536 = vpack.c.b16 %v2312, %v2308
    %v2537 = vpack.c.b16 %v2313, %v2309
    %v2538 = vpack.c.b16 %v2318, %v2314
    %v2539 = vpack.c.b16 %v2319, %v2315
    %v2540 = vpack.c.b16 %v2320, %v2316
    %v2541 = vpack.c.b16 %v2321, %v2317
    %v2542 = vpack.c.b16 %v2326, %v2322
    %v2543 = vpack.c.b16 %v2327, %v2323
    %v2544 = vpack.c.b16 %v2328, %v2324
    %v2545 = vpack.c.b16 %v2329, %v2325
    %v2546 = vpack.c.b16 %v2334, %v2330
    %v2547 = vpack.c.b16 %v2335, %v2331
    %v2548 = vpack.c.b16 %v2336, %v2332
    %v2549 = vpack.c.b16 %v2337, %v2333
    %v2550 = vpack.c.b16 %v2342, %v2338
    %v2551 = vpack.c.b16 %v2343, %v2339
    %v2552 = vpack.c.b16 %v2344, %v2340
    %v2553 = vpack.c.b16 %v2345, %v2341
    %v2554 = vpack.c.b16 %v2350, %v2346
    %v2555 = vpack.c.b16 %v2351, %v2347
    %v2556 = vpack.c.b16 %v2352, %v2348
    %v2557 = vpack.c.b16 %v2353, %v2349
    %v2558 = vpack.c.b16 %v2358, %v2354
    %v2559 = vpack.c.b16 %v2359, %v2355
    %v2560 = vpack.c.b16 %v2360, %v2356
    %v2561 = vpack.c.b16 %v2361, %v2357
    %v2562 = vpack.c.b16 %v2366, %v2362
    %v2563 = vpack.c.b16 %v2367, %v2363
    %v2564 = vpack.c.b16 %v2368, %v2364
    %v2565 = vpack.c.b16 %v2369, %v2365
    %v2566 = vpack.c.b16 %v2374, %v2370
    %v2567 = vpack.c.b16 %v2375, %v2371
    %v2568 = vpack.c.b16 %v2376, %v2372
    %v2569 = vpack.c.b16 %v2377, %v2373
    %v2570 = vpack.c.b16 %v2382, %v2378
    %v2571 = vpack.c.b16 %v2383, %v2379
    %v2572 = vpack.c.b16 %v2384, %v2380
    %v2573 = vpack.c.b16 %v2385, %v2381
    %v2574 = vpack.c.b16 %v2390, %v2386
    %v2575 = vpack.c.b16 %v2391, %v2387
    %v2576 = vpack.c.b16 %v2392, %v2388
    %v2577 = vpack.c.b16 %v2393, %v2389
    %v2578 = vpack.c.b16 %v2398, %v2394
    %v2579 = vpack.c.b16 %v2399, %v2395
    %v2580 = vpack.c.b16 %v2400, %v2396
    %v2581 = vpack.c.b16 %v2401, %v2397
    %v2582 = vpack.c.b16 %v2406, %v2402
    %v2583 = vpack.c.b16 %v2407, %v2403
    %v2584 = vpack.c.b16 %v2408, %v2404
    %v2585 = vpack.c.b16 %v2409, %v2405
    %v2586 = vpack.c.b16 %v2414, %v2410
    %v2587 = vpack.c.b16 %v2415, %v2411
    %v2588 = vpack.c.b16 %v2416, %v2412
    %v2589 = vpack.c.b16 %v2417, %v2413
    %v2590 = vpack.c.b16 %v2422, %v2418
    %v2591 = vpack.c.b16 %v2423, %v2419
    %v2592 = vpack.c.b16 %v2424, %v2420
    %v2593 = vpack.c.b16 %v2425, %v2421
    %v2594 = vpack.c.b16 %v2430, %v2426
    %v2595 = vpack.c.b16 %v2431, %v2427
    %v2596 = vpack.c.b16 %v2432, %v2428
    %v2597 = vpack.c.b16 %v2433, %v2429
    %v2598 = vpack.c.b16 %v2438, %v2434
    %v2599 = vpack.c.b16 %v2439, %v2435
    %v2600 = vpack.c.b16 %v2440, %v2436
    %v2601 = vpack.c.b16 %v2441, %v2437
    %v2602 = vpack.c.b16 %v2446, %v2442
    %v2603 = vpack.c.b16 %v2447, %v2443
    %v2604 = vpack.c.b16 %v2448, %v2444
    %v2605 = vpack.c.b16 %v2449, %v2445
    %v2606 = vpack.c.b16 %v2454, %v2450
    %v2607 = vpack.c.b16 %v2455, %v2451
    %v2608 = vpack.c.b16 %v2456, %v2452
    %v2609 = vpack.c.b16 %v2457, %v2453
    %v2610 = vpack.c.b16 %v2462, %v2458
    %v2611 = vpack.c.b16 %v2463, %v2459
    %v2612 = vpack.c.b16 %v2464, %v2460
    %v2613 = vpack.c.b16 %v2465, %v2461
    %v2614 = vpack.c.b16 %v2470, %v2466
    %v2615 = vpack.c.b16 %v2471, %v2467
    %v2616 = vpack.c.b16 %v2472, %v2468
    %v2617 = vpack.c.b16 %v2473, %v2469
    %v2618 = vpack.c.b16 %v2478, %v2474
    %v2619 = vpack.c.b16 %v2479, %v2475
    %v2620 = vpack.c.b16 %v2480, %v2476
    %v2621 = vpack.c.b16 %v2481, %v2477
    %v2622 = vpack.c.b16 %v2486, %v2482
    %v2623 = vpack.c.b16 %v2487, %v2483
    %v2624 = vpack.c.b16 %v2488, %v2484
    %v2625 = vpack.c.b16 %v2489, %v2485
    %v2626 = vpack.c.b16 %v2494, %v2490
    %v2627 = vpack.c.b16 %v2495, %v2491
    %v2628 = vpack.c.b16 %v2496, %v2492
    %v2629 = vpack.c.b16 %v2497, %v2493
    %v2630 = vpack.c.b16 %v2502, %v2498
    %v2631 = vpack.c.b16 %v2503, %v2499
    %v2632 = vpack.c.b16 %v2504, %v2500
    %v2633 = vpack.c.b16 %v2505, %v2501
    %2762 = vmatprep.subr.bf16.mxu0 %v2535
    %2763 = vmatpush1.bf16.msra.mxu0 %v2534
    %2764 = vmatprep.subr.bf16.mxu0 %v2531
    %2765 = vmatpush1.bf16.msra.mxu0 %v2530
    %2766 = vmatprep.subr.bf16.mxu0 %v2527
    %2767 = vmatpush1.bf16.msra.mxu0 %v2526
    %2768 = vmatprep.subr.bf16.mxu0 %v2523
    %2769 = vmatpush1.bf16.msra.mxu0 %v2522
    %2770 = vmatprep.subr.bf16.mxu0 %v2519
    %2771 = vmatpush1.bf16.msra.mxu0 %v2518
    %2772 = vmatprep.subr.bf16.mxu0 %v2515
    %2773 = vmatpush1.bf16.msra.mxu0 %v2514
    %2774 = vmatprep.subr.bf16.mxu0 %v2511
    %2775 = vmatpush1.bf16.msra.mxu0 %v2510
    %2776 = vmatprep.subr.bf16.mxu0 %v2507
    %2777 = vmatpush1.bf16.msra.mxu0 %v2506
    %2778 = vmatprep.subr.bf16.mxu0 %v2567
    %2779 = vmatpush2.bf16.msra.mxu0 %v2566
    %2780 = vmatprep.subr.bf16.mxu0 %v2563
    %2781 = vmatpush2.bf16.msra.mxu0 %v2562
    %2782 = vmatprep.subr.bf16.mxu0 %v2559
    %2783 = vmatpush2.bf16.msra.mxu0 %v2558
    %2784 = vmatprep.subr.bf16.mxu0 %v2555
    %2785 = vmatpush2.bf16.msra.mxu0 %v2554
    %2786 = vmatprep.subr.bf16.mxu0 %v2551
    %2787 = vmatpush2.bf16.msra.mxu0 %v2550
    %2788 = vmatprep.subr.bf16.mxu0 %v2547
    %2789 = vmatpush2.bf16.msra.mxu0 %v2546
    %2790 = vmatprep.subr.bf16.mxu0 %v2543
    %2791 = vmatpush2.bf16.msra.mxu0 %v2542
    %2792 = vmatprep.subr.bf16.mxu0 %v2539
    %2793 = vmatpush2.bf16.msra.mxu0 %v2538
    %2794 = vmatprep.mubr.bf16.mxu0 %v1049
    %2795 = vmatmul.mubr.bf16.gmra.mxu0 %v1048
    %v2796 = vpop.f32.mrf.mxu0
    %v2797 = vadd.f32 %v2034, %v2796
    %v2798 = vpop.f32.mrf.mxu0
    %v2799 = vadd.f32 %v2036, %v2798
    %v2800 = vpop.f32.mrf.mxu0
    %v2801 = vpop.f32.mrf.mxu0
    %2802 = vdwg.mxu0
    %2803 = vmatprep.subr.bf16.mxu0 %v2599
    %2804 = vmatpush1.bf16.msra.mxu0 %v2598
    %2805 = vmatprep.subr.bf16.mxu0 %v2595
    %2806 = vmatpush1.bf16.msra.mxu0 %v2594
    %2807 = vmatprep.subr.bf16.mxu0 %v2591
    %2808 = vmatpush1.bf16.msra.mxu0 %v2590
    %2809 = vmatprep.subr.bf16.mxu0 %v2587
    %2810 = vmatpush1.bf16.msra.mxu0 %v2586
    %2811 = vmatprep.subr.bf16.mxu0 %v2583
    %2812 = vmatpush1.bf16.msra.mxu0 %v2582
    %2813 = vmatprep.subr.bf16.mxu0 %v2579
    %2814 = vmatpush1.bf16.msra.mxu0 %v2578
    %2815 = vmatprep.subr.bf16.mxu0 %v2575
    %2816 = vmatpush1.bf16.msra.mxu0 %v2574
    %2817 = vmatprep.subr.bf16.mxu0 %v2571
    %2818 = vmatpush1.bf16.msra.mxu0 %v2570
    %2819 = vmatprep.subr.bf16.mxu0 %v2631
    %2820 = vmatpush2.bf16.msra.mxu0 %v2630
    %2821 = vmatprep.subr.bf16.mxu0 %v2627
    %2822 = vmatpush2.bf16.msra.mxu0 %v2626
    %2823 = vmatprep.subr.bf16.mxu0 %v2623
    %2824 = vmatpush2.bf16.msra.mxu0 %v2622
    %2825 = vmatprep.subr.bf16.mxu0 %v2619
    %2826 = vmatpush2.bf16.msra.mxu0 %v2618
    %2827 = vmatprep.subr.bf16.mxu0 %v2615
    %2828 = vmatpush2.bf16.msra.mxu0 %v2614
    %2829 = vmatprep.subr.bf16.mxu0 %v2611
    %2830 = vmatpush2.bf16.msra.mxu0 %v2610
    %2831 = vmatprep.subr.bf16.mxu0 %v2607
    %2832 = vmatpush2.bf16.msra.mxu0 %v2606
    %2833 = vmatprep.subr.bf16.mxu0 %v2603
    %2834 = vmatpush2.bf16.msra.mxu0 %v2602
    %2835 = vmatprep.mubr.bf16.mxu0 %v1051
    %2836 = vmatmul.mubr.bf16.gmra.mxu0 %v1050
    %v2837 = vpop.f32.mrf.mxu0
    %v2838 = vadd.f32 %v2797, %v2837
    %v2839 = vpop.f32.mrf.mxu0
    %v2840 = vadd.f32 %v2799, %v2839
    %v2841 = vpop.f32.mrf.mxu0
    %v2842 = vpop.f32.mrf.mxu0
    %2843 = vdwg.mxu0
    %2844 = vmatprep.subr.bf16.mxu0 %v2537
    %2845 = vmatpush1.bf16.msra.mxu0 %v2536
    %2846 = vmatprep.subr.bf16.mxu0 %v2533
    %2847 = vmatpush1.bf16.msra.mxu0 %v2532
    %2848 = vmatprep.subr.bf16.mxu0 %v2529
    %2849 = vmatpush1.bf16.msra.mxu0 %v2528
    %2850 = vmatprep.subr.bf16.mxu0 %v2525
    %2851 = vmatpush1.bf16.msra.mxu0 %v2524
    %2852 = vmatprep.subr.bf16.mxu0 %v2521
    %2853 = vmatpush1.bf16.msra.mxu0 %v2520
    %2854 = vmatprep.subr.bf16.mxu0 %v2517
    %2855 = vmatpush1.bf16.msra.mxu0 %v2516
    %2856 = vmatprep.subr.bf16.mxu0 %v2513
    %2857 = vmatpush1.bf16.msra.mxu0 %v2512
    %2858 = vmatprep.subr.bf16.mxu0 %v2509
    %2859 = vmatpush1.bf16.msra.mxu0 %v2508
    %2860 = vmatprep.subr.bf16.mxu0 %v2569
    %2861 = vmatpush2.bf16.msra.mxu0 %v2568
    %2862 = vmatprep.subr.bf16.mxu0 %v2565
    %2863 = vmatpush2.bf16.msra.mxu0 %v2564
    %2864 = vmatprep.subr.bf16.mxu0 %v2561
    %2865 = vmatpush2.bf16.msra.mxu0 %v2560
    %2866 = vmatprep.subr.bf16.mxu0 %v2557
    %2867 = vmatpush2.bf16.msra.mxu0 %v2556
    %2868 = vmatprep.subr.bf16.mxu0 %v2553
    %2869 = vmatpush2.bf16.msra.mxu0 %v2552
    %2870 = vmatprep.subr.bf16.mxu0 %v2549
    %2871 = vmatpush2.bf16.msra.mxu0 %v2548
    %2872 = vmatprep.subr.bf16.mxu0 %v2545
    %2873 = vmatpush2.bf16.msra.mxu0 %v2544
    %2874 = vmatprep.subr.bf16.mxu0 %v2541
    %2875 = vmatpush2.bf16.msra.mxu0 %v2540
    %2876 = vmatprep.mubr.bf16.mxu0 %v1049
    %2877 = vmatmul.mubr.bf16.gmra.mxu0 %v1048
    %v2878 = vpop.f32.mrf.mxu0
    %v2879 = vadd.f32 %v2116, %v2878
    %v2880 = vpop.f32.mrf.mxu0
    %v2881 = vadd.f32 %v2118, %v2880
    %v2882 = vpop.f32.mrf.mxu0
    %v2883 = vpop.f32.mrf.mxu0
    %2884 = vdwg.mxu0
    %2885 = vmatprep.subr.bf16.mxu0 %v2601
    %2886 = vmatpush1.bf16.msra.mxu0 %v2600
    %2887 = vmatprep.subr.bf16.mxu0 %v2597
    %2888 = vmatpush1.bf16.msra.mxu0 %v2596
    %2889 = vmatprep.subr.bf16.mxu0 %v2593
    %2890 = vmatpush1.bf16.msra.mxu0 %v2592
    %2891 = vmatprep.subr.bf16.mxu0 %v2589
    %2892 = vmatpush1.bf16.msra.mxu0 %v2588
    %2893 = vmatprep.subr.bf16.mxu0 %v2585
    %2894 = vmatpush1.bf16.msra.mxu0 %v2584
    %2895 = vmatprep.subr.bf16.mxu0 %v2581
    %2896 = vmatpush1.bf16.msra.mxu0 %v2580
    %2897 = vmatprep.subr.bf16.mxu0 %v2577
    %2898 = vmatpush1.bf16.msra.mxu0 %v2576
    %2899 = vmatprep.subr.bf16.mxu0 %v2573
    %2900 = vmatpush1.bf16.msra.mxu0 %v2572
    %2901 = vmatprep.subr.bf16.mxu0 %v2633
    %2902 = vmatpush2.bf16.msra.mxu0 %v2632
    %2903 = vmatprep.subr.bf16.mxu0 %v2629
    %2904 = vmatpush2.bf16.msra.mxu0 %v2628
    %2905 = vmatprep.subr.bf16.mxu0 %v2625
    %2906 = vmatpush2.bf16.msra.mxu0 %v2624
    %2907 = vmatprep.subr.bf16.mxu0 %v2621
    %2908 = vmatpush2.bf16.msra.mxu0 %v2620
    %2909 = vmatprep.subr.bf16.mxu0 %v2617
    %2910 = vmatpush2.bf16.msra.mxu0 %v2616
    %2911 = vmatprep.subr.bf16.mxu0 %v2613
    %2912 = vmatpush2.bf16.msra.mxu0 %v2612
    %2913 = vmatprep.subr.bf16.mxu0 %v2609
    %2914 = vmatpush2.bf16.msra.mxu0 %v2608
    %2915 = vmatprep.subr.bf16.mxu0 %v2605
    %2916 = vmatpush2.bf16.msra.mxu0 %v2604
    %2917 = vmatprep.mubr.bf16.mxu0 %v1051
    %2918 = vmatmul.mubr.bf16.gmra.mxu0 %v1050
    %v2919 = vpop.f32.mrf.mxu0
    %v2920 = vadd.f32 %v2879, %v2919
    %v2921 = vpop.f32.mrf.mxu0
    %v2922 = vadd.f32 %v2881, %v2921
    %v2923 = vpop.f32.mrf.mxu0
    %v2924 = vpop.f32.mrf.mxu0
    %2925 = vdwg.mxu0
    %v2926 = vld [vmem:[#allocation10] sm:$0xf]
    %v2928 = vlaneseq
    %v2929 = vshrl.u32 %v2928, 7
    %v2930 = vsub.s32 0, %v2929
    %v2931 = vrot.slane %v2926, %v2930
    %v2932 = vlaneseq
    %v2933 = vshrl.u32 %v2932, 7
    %v2934 = vsub.s32 1, %v2933
    %v2935 = vrot.slane %v2926, %v2934
    %v2936 = vlaneseq
    %v2937 = vshrl.u32 %v2936, 7
    %v2938 = vsub.s32 2, %v2937
    %v2939 = vrot.slane %v2926, %v2938
    %v2940 = vlaneseq
    %v2941 = vshrl.u32 %v2940, 7
    %v2942 = vsub.s32 3, %v2941
    %v2943 = vrot.slane %v2926, %v2942
    %v2948 = vadd.f32 %v2838, %v2931
    %v2949 = vadd.f32 %v2840, %v2935
    %v2950 = vadd.f32 %v2920, %v2939
    %v2951 = vadd.f32 %v2922, %v2943
    %v2952 = vpack.c.bf16 %v2948, %v2948
    %v2953 = vpack.c.bf16 %v2949, %v2949
    %v2954 = vpack.c.bf16 %v2950, %v2950
    %v2955 = vpack.c.bf16 %v2951, %v2951
    %v2956 = vld [vmem:[%s11] sm:$0xf]
    %v2957 = vld [vmem:[%s11 + $0x4] sm:$0xf]
    %v2958 = vld [vmem:[%s11 + $0x8] sm:$0xf]
    %v2959 = vld [vmem:[%s11 + $0xc] sm:$0xf]
    %v2960 = vld [vmem:[%s11 + $0x10] sm:$0xf]
    %v2961 = vld [vmem:[%s11 + $0x14] sm:$0xf]
    %v2962 = vld [vmem:[%s11 + $0x18] sm:$0xf]
    %v2963 = vld [vmem:[%s11 + $0x1c] sm:$0xf]
    %v2964 = vld [vmem:[%s11 + $0x20] sm:$0xf]
    %v2965 = vld [vmem:[%s11 + $0x24] sm:$0xf]
    %v2966 = vld [vmem:[%s11 + $0x28] sm:$0xf]
    %v2967 = vld [vmem:[%s11 + $0x2c] sm:$0xf]
    %v2968 = vld [vmem:[%s11 + $0x30] sm:$0xf]
    %v2969 = vld [vmem:[%s11 + $0x34] sm:$0xf]
    %v2970 = vld [vmem:[%s11 + $0x38] sm:$0xf]
    %v2971 = vld [vmem:[%s11 + $0x3c] sm:$0xf]
    %v2972 = vld [vmem:[%s11 + $0x40] sm:$0xf]
    %v2973 = vld [vmem:[%s11 + $0x44] sm:$0xf]
    %v2974 = vld [vmem:[%s11 + $0x48] sm:$0xf]
    %v2975 = vld [vmem:[%s11 + $0x4c] sm:$0xf]
    %v2976 = vld [vmem:[%s11 + $0x50] sm:$0xf]
    %v2977 = vld [vmem:[%s11 + $0x54] sm:$0xf]
    %v2978 = vld [vmem:[%s11 + $0x58] sm:$0xf]
    %v2979 = vld [vmem:[%s11 + $0x5c] sm:$0xf]
    %v2980 = vld [vmem:[%s11 + $0x60] sm:$0xf]
    %v2981 = vld [vmem:[%s11 + $0x64] sm:$0xf]
    %v2982 = vld [vmem:[%s11 + $0x68] sm:$0xf]
    %v2983 = vld [vmem:[%s11 + $0x6c] sm:$0xf]
    %v2984 = vld [vmem:[%s11 + $0x70] sm:$0xf]
    %v2985 = vld [vmem:[%s11 + $0x74] sm:$0xf]
    %v2986 = vld [vmem:[%s11 + $0x78] sm:$0xf]
    %v2987 = vld [vmem:[%s11 + $0x7c] sm:$0xf]
    %v2988 = vld [vmem:[%s11 + $0x80] sm:$0xf]
    %v2989 = vld [vmem:[%s11 + $0x84] sm:$0xf]
    %v2990 = vld [vmem:[%s11 + $0x88] sm:$0xf]
    %v2991 = vld [vmem:[%s11 + $0x8c] sm:$0xf]
    %v2992 = vld [vmem:[%s11 + $0x90] sm:$0xf]
    %v2993 = vld [vmem:[%s11 + $0x94] sm:$0xf]
    %v2994 = vld [vmem:[%s11 + $0x98] sm:$0xf]
    %v2995 = vld [vmem:[%s11 + $0x9c] sm:$0xf]
    %v2996 = vld [vmem:[%s11 + $0xa0] sm:$0xf]
    %v2997 = vld [vmem:[%s11 + $0xa4] sm:$0xf]
    %v2998 = vld [vmem:[%s11 + $0xa8] sm:$0xf]
    %v2999 = vld [vmem:[%s11 + $0xac] sm:$0xf]
    %v3000 = vld [vmem:[%s11 + $0xb0] sm:$0xf]
    %v3001 = vld [vmem:[%s11 + $0xb4] sm:$0xf]
    %v3002 = vld [vmem:[%s11 + $0xb8] sm:$0xf]
    %v3003 = vld [vmem:[%s11 + $0xbc] sm:$0xf]
    %v3004 = vld [vmem:[%s11 + $0xc0] sm:$0xf]
    %v3005 = vld [vmem:[%s11 + $0xc4] sm:$0xf]
    %v3006 = vld [vmem:[%s11 + $0xc8] sm:$0xf]
    %v3007 = vld [vmem:[%s11 + $0xcc] sm:$0xf]
    %v3008 = vld [vmem:[%s11 + $0xd0] sm:$0xf]
    %v3009 = vld [vmem:[%s11 + $0xd4] sm:$0xf]
    %v3010 = vld [vmem:[%s11 + $0xd8] sm:$0xf]
    %v3011 = vld [vmem:[%s11 + $0xdc] sm:$0xf]
    %v3012 = vld [vmem:[%s11 + $0xe0] sm:$0xf]
    %v3013 = vld [vmem:[%s11 + $0xe4] sm:$0xf]
    %v3014 = vld [vmem:[%s11 + $0xe8] sm:$0xf]
    %v3015 = vld [vmem:[%s11 + $0xec] sm:$0xf]
    %v3016 = vld [vmem:[%s11 + $0xf0] sm:$0xf]
    %v3017 = vld [vmem:[%s11 + $0xf4] sm:$0xf]
    %v3018 = vld [vmem:[%s11 + $0xf8] sm:$0xf]
    %v3019 = vld [vmem:[%s11 + $0xfc] sm:$0xf]
    %v3020 = vld [vmem:[#allocation12] sm:$0x1]
    %v3022 = vlaneseq
    %v3023 = vshrl.u32 %v3022, 7
    %v3024 = vsub.s32 0, %v3023
    %v3025 = vrot.slane %v3020, %v3024
    %v3091 = vunpack.c.l.b16 %v2956
    %v3092 = vunpack.c.l.b16 %v2957
    %v3093 = vunpack.c.l.b16 %v2958
    %v3094 = vunpack.c.l.b16 %v2959
    %v3095 = vunpack.c.l.b16 %v2960
    %v3096 = vunpack.c.l.b16 %v2961
    %v3097 = vunpack.c.l.b16 %v2962
    %v3098 = vunpack.c.l.b16 %v2963
    %v3099 = vunpack.c.l.b16 %v2964
    %v3100 = vunpack.c.l.b16 %v2965
    %v3101 = vunpack.c.l.b16 %v2966
    %v3102 = vunpack.c.l.b16 %v2967
    %v3103 = vunpack.c.l.b16 %v2968
    %v3104 = vunpack.c.l.b16 %v2969
    %v3105 = vunpack.c.l.b16 %v2970
    %v3106 = vunpack.c.l.b16 %v2971
    %v3107 = vunpack.c.l.b16 %v2972
    %v3108 = vunpack.c.l.b16 %v2973
    %v3109 = vunpack.c.l.b16 %v2974
    %v3110 = vunpack.c.l.b16 %v2975
    %v3111 = vunpack.c.l.b16 %v2976
    %v3112 = vunpack.c.l.b16 %v2977
    %v3113 = vunpack.c.l.b16 %v2978
    %v3114 = vunpack.c.l.b16 %v2979
    %v3115 = vunpack.c.l.b16 %v2980
    %v3116 = vunpack.c.l.b16 %v2981
    %v3117 = vunpack.c.l.b16 %v2982
    %v3118 = vunpack.c.l.b16 %v2983
    %v3119 = vunpack.c.l.b16 %v2984
    %v3120 = vunpack.c.l.b16 %v2985
    %v3121 = vunpack.c.l.b16 %v2986
    %v3122 = vunpack.c.l.b16 %v2987
    %v3123 = vunpack.c.l.b16 %v2988
    %v3124 = vunpack.c.l.b16 %v2989
    %v3125 = vunpack.c.l.b16 %v2990
    %v3126 = vunpack.c.l.b16 %v2991
    %v3127 = vunpack.c.l.b16 %v2992
    %v3128 = vunpack.c.l.b16 %v2993
    %v3129 = vunpack.c.l.b16 %v2994
    %v3130 = vunpack.c.l.b16 %v2995
    %v3131 = vunpack.c.l.b16 %v2996
    %v3132 = vunpack.c.l.b16 %v2997
    %v3133 = vunpack.c.l.b16 %v2998
    %v3134 = vunpack.c.l.b16 %v2999
    %v3135 = vunpack.c.l.b16 %v3000
    %v3136 = vunpack.c.l.b16 %v3001
    %v3137 = vunpack.c.l.b16 %v3002
    %v3138 = vunpack.c.l.b16 %v3003
    %v3139 = vunpack.c.l.b16 %v3004
    %v3140 = vunpack.c.l.b16 %v3005
    %v3141 = vunpack.c.l.b16 %v3006
    %v3142 = vunpack.c.l.b16 %v3007
    %v3143 = vunpack.c.l.b16 %v3008
    %v3144 = vunpack.c.l.b16 %v3009
    %v3145 = vunpack.c.l.b16 %v3010
    %v3146 = vunpack.c.l.b16 %v3011
    %v3147 = vunpack.c.l.b16 %v3012
    %v3148 = vunpack.c.l.b16 %v3013
    %v3149 = vunpack.c.l.b16 %v3014
    %v3150 = vunpack.c.l.b16 %v3015
    %v3151 = vunpack.c.l.b16 %v3016
    %v3152 = vunpack.c.l.b16 %v3017
    %v3153 = vunpack.c.l.b16 %v3018
    %v3154 = vunpack.c.l.b16 %v3019
    %v3155 = vpack.c.b16 %v3092, %v3091
    %v3156 = vpack.c.b16 %v3094, %v3093
    %v3157 = vpack.c.b16 %v3096, %v3095
    %v3158 = vpack.c.b16 %v3098, %v3097
    %v3159 = vpack.c.b16 %v3100, %v3099
    %v3160 = vpack.c.b16 %v3102, %v3101
    %v3161 = vpack.c.b16 %v3104, %v3103
    %v3162 = vpack.c.b16 %v3106, %v3105
    %v3163 = vpack.c.b16 %v3108, %v3107
    %v3164 = vpack.c.b16 %v3110, %v3109
    %v3165 = vpack.c.b16 %v3112, %v3111
    %v3166 = vpack.c.b16 %v3114, %v3113
    %v3167 = vpack.c.b16 %v3116, %v3115
    %v3168 = vpack.c.b16 %v3118, %v3117
    %v3169 = vpack.c.b16 %v3120, %v3119
    %v3170 = vpack.c.b16 %v3122, %v3121
    %v3171 = vpack.c.b16 %v3124, %v3123
    %v3172 = vpack.c.b16 %v3126, %v3125
    %v3173 = vpack.c.b16 %v3128, %v3127
    %v3174 = vpack.c.b16 %v3130, %v3129
    %v3175 = vpack.c.b16 %v3132, %v3131
    %v3176 = vpack.c.b16 %v3134, %v3133
    %v3177 = vpack.c.b16 %v3136, %v3135
    %v3178 = vpack.c.b16 %v3138, %v3137
    %v3179 = vpack.c.b16 %v3140, %v3139
    %v3180 = vpack.c.b16 %v3142, %v3141
    %v3181 = vpack.c.b16 %v3144, %v3143
    %v3182 = vpack.c.b16 %v3146, %v3145
    %v3183 = vpack.c.b16 %v3148, %v3147
    %v3184 = vpack.c.b16 %v3150, %v3149
    %v3185 = vpack.c.b16 %v3152, %v3151
    %v3186 = vpack.c.b16 %v3154, %v3153
    %3219 = vmatprep.subr.bf16.mxu0 0
    %3220 = vmatpush1.bf16.msra.mxu0 %v3162
    %3221 = vmatprep.subr.bf16.mxu0 0
    %3222 = vmatpush1.bf16.msra.mxu0 %v3161
    %3223 = vmatprep.subr.bf16.mxu0 0
    %3224 = vmatpush1.bf16.msra.mxu0 %v3160
    %3225 = vmatprep.subr.bf16.mxu0 0
    %3226 = vmatpush1.bf16.msra.mxu0 %v3159
    %3227 = vmatprep.subr.bf16.mxu0 0
    %3228 = vmatpush1.bf16.msra.mxu0 %v3158
    %3229 = vmatprep.subr.bf16.mxu0 0
    %3230 = vmatpush1.bf16.msra.mxu0 %v3157
    %3231 = vmatprep.subr.bf16.mxu0 0
    %3232 = vmatpush1.bf16.msra.mxu0 %v3156
    %3233 = vmatprep.subr.bf16.mxu0 0
    %3234 = vmatpush1.bf16.msra.mxu0 %v3155
    %3235 = vmatprep.subr.bf16.mxu0 0
    %3236 = vmatpush2.bf16.msra.mxu0 %v3170
    %3237 = vmatprep.subr.bf16.mxu0 0
    %3238 = vmatpush2.bf16.msra.mxu0 %v3169
    %3239 = vmatprep.subr.bf16.mxu0 0
    %3240 = vmatpush2.bf16.msra.mxu0 %v3168
    %3241 = vmatprep.subr.bf16.mxu0 0
    %3242 = vmatpush2.bf16.msra.mxu0 %v3167
    %3243 = vmatprep.subr.bf16.mxu0 0
    %3244 = vmatpush2.bf16.msra.mxu0 %v3166
    %3245 = vmatprep.subr.bf16.mxu0 0
    %3246 = vmatpush2.bf16.msra.mxu0 %v3165
    %3247 = vmatprep.subr.bf16.mxu0 0
    %3248 = vmatpush2.bf16.msra.mxu0 %v3164
    %3249 = vmatprep.subr.bf16.mxu0 0
    %3250 = vmatpush2.bf16.msra.mxu0 %v3163
    %3251 = vmatprep.mubr.bf16.mxu0 %v2953
    %3252 = vmatmul.mubr.bf16.gmra.mxu0 %v2952
    %v3253 = vpop.f32.mrf.mxu0
    %v3254 = vadd.f32 %v3025, %v3253
    %v3255 = vpop.f32.mrf.mxu0
    %v3256 = vpop.f32.mrf.mxu0
    %v3257 = vpop.f32.mrf.mxu0
    %3258 = vdwg.mxu0
    %3259 = vmatprep.subr.bf16.mxu0 0
    %3260 = vmatpush1.bf16.msra.mxu0 %v3178
    %3261 = vmatprep.subr.bf16.mxu0 0
    %3262 = vmatpush1.bf16.msra.mxu0 %v3177
    %3263 = vmatprep.subr.bf16.mxu0 0
    %3264 = vmatpush1.bf16.msra.mxu0 %v3176
    %3265 = vmatprep.subr.bf16.mxu0 0
    %3266 = vmatpush1.bf16.msra.mxu0 %v3175
    %3267 = vmatprep.subr.bf16.mxu0 0
    %3268 = vmatpush1.bf16.msra.mxu0 %v3174
    %3269 = vmatprep.subr.bf16.mxu0 0
    %3270 = vmatpush1.bf16.msra.mxu0 %v3173
    %3271 = vmatprep.subr.bf16.mxu0 0
    %3272 = vmatpush1.bf16.msra.mxu0 %v3172
    %3273 = vmatprep.subr.bf16.mxu0 0
    %3274 = vmatpush1.bf16.msra.mxu0 %v3171
    %3275 = vmatprep.subr.bf16.mxu0 0
    %3276 = vmatpush2.bf16.msra.mxu0 %v3186
    %3277 = vmatprep.subr.bf16.mxu0 0
    %3278 = vmatpush2.bf16.msra.mxu0 %v3185
    %3279 = vmatprep.subr.bf16.mxu0 0
    %3280 = vmatpush2.bf16.msra.mxu0 %v3184
    %3281 = vmatprep.subr.bf16.mxu0 0
    %3282 = vmatpush2.bf16.msra.mxu0 %v3183
    %3283 = vmatprep.subr.bf16.mxu0 0
    %3284 = vmatpush2.bf16.msra.mxu0 %v3182
    %3285 = vmatprep.subr.bf16.mxu0 0
    %3286 = vmatpush2.bf16.msra.mxu0 %v3181
    %3287 = vmatprep.subr.bf16.mxu0 0
    %3288 = vmatpush2.bf16.msra.mxu0 %v3180
    %3289 = vmatprep.subr.bf16.mxu0 0
    %3290 = vmatpush2.bf16.msra.mxu0 %v3179
    %3291 = vmatprep.mubr.bf16.mxu0 %v2955
    %3292 = vmatmul.mubr.bf16.gmra.mxu0 %v2954
    %v3293 = vpop.f32.mrf.mxu0
    %v3294 = vadd.f32 %v3254, %v3293
    %v3295 = vpop.f32.mrf.mxu0
    %v3296 = vpop.f32.mrf.mxu0
    %v3297 = vpop.f32.mrf.mxu0
    %3298 = vdwg.mxu0
    %3299 = vst [vmem:[#allocation13] sm:$0x3] %v3294
    // Predicated region
    $region78: #{cnn_nv_forward.1} parent=1 // pred_check
      _
    $region79: #{cnn_nv_forward.1} parent=1 // pred_check_branch
      %3301 = sbr.rel (0) target = $region81
    $region80: #{cnn_nv_forward.1} parent=1 // pred_region
      %s3303 = ssub.s32 32, 32
      %3304 = vsyncadd [#allocation6], %s3303
      %s3306 = sshll.u32 [#allocation13], 4
      %s3307 = int_to_ptr.vmem [resolvable:$true] %s3306
      %3309 = dma.vmem_to_hbm [thread:$0]  %s3307, 32, %s13, [#allocation6]
    $region81: #{cnn_nv_forward.1} parent=1 // pred_fallthru
      _
    // Predicated region
    $region82: #{cnn_nv_forward.1} parent=1 // pred_check
      _
    $region83: #{cnn_nv_forward.1} parent=1 // pred_check_branch
      %3311 = sbr.rel (0) target = $region85
    $region84: #{cnn_nv_forward.1} parent=1 // pred_region
      %3312 = dma.done [#allocation6], 32
    $region85: #{cnn_nv_forward.1} parent=1 // pred_fallthru
      _
    %3313 = vsyncpa [#allocation5], 1
    %3314 = vsyncpa [#allocation8], 1
    %3315 = vsyncpa [#allocation11], 1
    %3316 = vsyncpa [#allocation6], 1
  %3317 = vsyncmov [#allocation3]
  %s3318 = vpop.sfrf %3317
  %p3319 = scmp.eq.s32.totalorder %s3318, 0
  %p3320 = pneg %p3319
  %3322 = shalt.err (%p3320)
  %s3323 = scalar_lea.sflag [#allocation3], 1
  %3324 = vsyncmov %s3323
  %s3325 = vpop.sfrf %3324
  %p3326 = scmp.eq.s32.totalorder %s3325, 0
  %p3327 = pneg %p3326
  %3329 = shalt.err (%p3327)

</llo_original>
